<compile_context>
chip_gen: v7x
topology: tpu7x:2x2x1
jax: 0.10.0
libtpu: 0.0.40
codegen_flags: <defaults>
</compile_context>

<pallas_src>
import functools

import jax
import jax.numpy as jnp
from jax import lax
from jax.experimental import pallas as pl
from jax.experimental.pallas import tpu as pltpu


def _round_up(x, m):
    return ((x + m - 1) // m) * m


def _vmem_budget_bytes():
    """~75% of physical per-TensorCore VMEM, conservative fallback (fits v7x)."""
    try:
        cap = int(pltpu.get_tpu_info().vmem_capacity_bytes)
        if cap > 0:
            return (cap * 3) // 4
    except Exception:
        pass
    return 48 << 20  # safe on v7x (64 MiB); v5e/v6e have 128 MiB physical


def _choose_tb(B, Np, Dp, Hp, requested, align_bytes, budget):
    """Graphs per grid step: fit double-buffered blocks + live intermediates in VMEM."""
    in_per_graph = Np * Dp * 4 * 2 + Np * Np * 2 * 2          # xq+xc f32, aq+ac bf16
    out_per_graph = Np * Np * align_bytes                      # alignment block (0 if score-only)
    interm_per_graph = 6 * Np * Np * 4 + 2 * Np * Hp * 4      # s, p, aqp, pac, temps, hq, hc
    const = 2 * Dp * Hp * 4                                    # double-buffered weight
    tb_cap = requested
    if B >= 2:
        tb_cap = min(tb_cap, max(1, B // 2))                   # keep grid >= 2 steps (2-TC sharding)
    tb = max(1, min(tb_cap, B))
    while tb > 1 and const + tb * (2 * (in_per_graph + out_per_graph) + interm_per_graph) > budget:
        tb -= 1
    return tb


# ----------------------------------------------------------------------------
# Shared per-block compute: TB graphs per grid step.
# ----------------------------------------------------------------------------
def _compute_block(sizes_ref, xq_ref, xc_ref, aq_ref, ac_ref, w_ref, *, matmul_dtype):
    tb, n, dp = xq_ref.shape
    hp = w_ref.shape[1]
    b0 = pl.program_id(0) * tb
    f32 = jnp.float32
    mm = lambda x: x.astype(matmul_dtype)

    # Shared linear projection: fold (graph, node) into the MXU M dimension.
    # Two dense dots; no VMEM concat copy.
    w = mm(w_ref[...])
    hq = jnp.dot(mm(xq_ref[...].reshape(tb * n, dp)), w,
                 preferred_element_type=f32).reshape(tb, n, hp)
    hc = jnp.dot(mm(xc_ref[...].reshape(tb * n, dp)), w,
                 preferred_element_type=f32).reshape(tb, n, hp)

    # Pairwise similarity (flash-attention-style q·k^T contraction).
    s = jnp.einsum("bnh,bmh->bnm", mm(hq), mm(hc),
                   preferred_element_type=f32)                      # (TB, N, N) f32

    # Broadcast-shaped validity masks from prefetched SMEM sizes.
    nq = jnp.stack([sizes_ref[2 * (b0 + t)] for t in range(tb)]).reshape(tb, 1, 1)
    nc = jnp.stack([sizes_ref[2 * (b0 + t) + 1] for t in range(tb)]).reshape(tb, 1, 1)
    row = lax.broadcasted_iota(jnp.int32, (tb, n, 1), 1)
    col = lax.broadcasted_iota(jnp.int32, (tb, 1, n), 2)
    qmask = row < nq                                                # (TB, N, 1) bool
    cmask = col < nc                                                # (TB, 1, N) bool

    # Size-masked softmax over corpus nodes (f32).
    s_masked = jnp.where(cmask, s, jnp.float32(-1e30))
    m = jnp.max(s_masked, axis=-1, keepdims=True)
    e = jnp.exp(s_masked - m)
    denom = jnp.sum(e, axis=-1, keepdims=True)
    p = e * pl.reciprocal(denom, approx=True)                       # EUP reciprocal
    p = jnp.where(cmask, p, 0.0)                                    # handles n_c == 0 too
    p = jnp.where(qmask, p, 0.0)

    # Node-alignment score: sum(S * P). Lane reduce, then sublane reduce.
    node = jnp.sum(s * p, axis=-1, keepdims=True)
    node = jnp.sum(node, axis=1, keepdims=True)                     # (TB, 1, 1)

    # Edge-consistency score: sum(A_q ⊙ P A_c P^T) == sum((A_q P) ⊙ (P A_c)).
    # Two standard-contraction matmuls; no transposed RHS, one fewer N^2 temp.
    p_mm = mm(p)
    aqp = jnp.einsum("bij,bjl->bil", mm(aq_ref[...]), p_mm,
                     preferred_element_type=f32)                    # (TB, N, N)
    pac = jnp.einsum("bik,bkl->bil", p_mm, mm(ac_ref[...]),
                     preferred_element_type=f32)                    # (TB, N, N)
    edge = jnp.sum(aqp * pac, axis=-1, keepdims=True)
    edge = jnp.sum(edge, axis=1, keepdims=True)                     # (TB, 1, 1)

    return node + edge, p


def _alignment_edge_kernel(sizes_ref, xq_ref, xc_ref, aq_ref, ac_ref, w_ref,
                           score_ref, align_ref, *, matmul_dtype):
    score, p = _compute_block(sizes_ref, xq_ref, xc_ref, aq_ref, ac_ref, w_ref,
                              matmul_dtype=matmul_dtype)
    score_ref[...] = score
    align_ref[...] = p.astype(align_ref.dtype)


def _score_only_kernel(sizes_ref, xq_ref, xc_ref, aq_ref, ac_ref, w_ref,
                       score_ref, *, matmul_dtype):
    score, _ = _compute_block(sizes_ref, xq_ref, xc_ref, aq_ref, ac_ref, w_ref,
                              matmul_dtype=matmul_dtype)
    score_ref[...] = score


# ----------------------------------------------------------------------------
# Wrapper: lane-dense padding, VMEM-aware batch blocking, BlockSpecs.
# ----------------------------------------------------------------------------
def _forward_pallas(graph_sizes, xq, xc, aq, ac, w, *, with_alignment,
                    matmul_dtype=jnp.bfloat16, alignment_dtype=jnp.float32,
                    adjacency_dtype=jnp.bfloat16, max_graphs_per_block=8,
                    lane_multiple=128, vmem_limit_bytes=None):
    B, N, D = xq.shape
    H = w.shape[1]

    # Behavior is undefined for sizes > N; clamp defensively.
    sizes = jnp.minimum(graph_sizes.astype(jnp.int32), jnp.int32(N))

    # Lane-dense padding: last dim of every NxN tensor / alignment output maps
    # to lanes, so N must be a multiple of 128 (not just 8).
    # TODO(synk): for tiny graphs (N<=32) pack several graphs along the lane axis.
    Np = _round_up(N, 128)
    Dp = _round_up(D, lane_multiple)
    Hp = _round_up(H, lane_multiple)

    budget = _vmem_budget_bytes()
    align_bytes = jnp.dtype(alignment_dtype).itemsize if with_alignment else 0
    TB = _choose_tb(B, Np, Dp, Hp, max_graphs_per_block, align_bytes, budget)
    Bp = _round_up(B, TB)
    if vmem_limit_bytes is None:
        vmem_limit_bytes = int(budget)

    def pad3(x, d1, d2, dtype):
        x = x.astype(dtype)
        pb, p1, p2 = Bp - x.shape[0], d1 - x.shape[1], d2 - x.shape[2]
        if pb or p1 or p2:
            x = jnp.pad(x, ((0, pb), (0, p1), (0, p2)))
        return x

    xq_p = pad3(xq, Np, Dp, jnp.float32)
    xc_p = pad3(xc, Np, Dp, jnp.float32)
    # Adjacency is 0/1 -> exact in bf16; halves the dominant HBM input stream.
    aq_p = pad3(aq, Np, Np, adjacency_dtype)
    ac_p = pad3(ac, Np, Np, adjacency_dtype)
    w_p = w.astype(jnp.float32)
    if (Dp, Hp) != (D, H):
        w_p = jnp.pad(w_p, ((0, Dp - D), (0, Hp - H)))
    # Flattened 1D sizes for scalar prefetch (avoids 2D SMEM padding blowup).
    sizes_p = jnp.pad(sizes.reshape(-1), (0, 2 * (Bp - B)))   # padded graphs: size 0 (safe)

    grid = (Bp // TB,)
    in_specs = [
        pl.BlockSpec((TB, Np, Dp), lambda i, sz: (i, 0, 0)),   # xq
        pl.BlockSpec((TB, Np, Dp), lambda i, sz: (i, 0, 0)),   # xc
        pl.BlockSpec((TB, Np, Np), lambda i, sz: (i, 0, 0)),   # A_q
        pl.BlockSpec((TB, Np, Np), lambda i, sz: (i, 0, 0)),   # A_c
        pl.BlockSpec((Dp, Hp),     lambda i, sz: (0, 0)),      # W (shared)
    ]
    score_spec = pl.BlockSpec((TB, 1, 1), lambda i, sz: (i, 0, 0))
    score_shape = jax.ShapeDtypeStruct((Bp, 1, 1), jnp.float32)

    cparams = pltpu.CompilerParams(
        dimension_semantics=("parallel",),            # batch blocks are independent
        vmem_limit_bytes=vmem_limit_bytes,
    )

    if with_alignment:
        kernel = functools.partial(_alignment_edge_kernel, matmul_dtype=matmul_dtype)
        score, align = pl.pallas_call(
            kernel,
            out_shape=(score_shape,
                       jax.ShapeDtypeStruct((Bp, Np, Np), alignment_dtype)),
            grid_spec=pltpu.PrefetchScalarGridSpec(
                num_scalar_prefetch=1, grid=grid,
                in_specs=in_specs,
                out_specs=(score_spec,
                           pl.BlockSpec((TB, Np, Np), lambda i, sz: (i, 0, 0)))),
            compiler_params=cparams,
        )(sizes_p, xq_p, xc_p, aq_p, ac_p, w_p)
        return score[:B, 0, 0], align[:B, :N, :N]
    else:
        kernel = functools.partial(_score_only_kernel, matmul_dtype=matmul_dtype)
        score = pl.pallas_call(
            kernel,
            out_shape=score_shape,
            grid_spec=pltpu.PrefetchScalarGridSpec(
                num_scalar_prefetch=1, grid=grid,
                in_specs=in_specs, out_specs=score_spec),
            compiler_params=cparams,
        )(sizes_p, xq_p, xc_p, aq_p, ac_p, w_p)
        return score[:B, 0, 0]


# ----------------------------------------------------------------------------
# Module wrapper mirroring the PyTorch template's method structure.
# ----------------------------------------------------------------------------
class AlignmentEdgeModelPallas:
    # TODO(synk): the PyTorch base class is abstract (forward_with_alignment has
    # no reference body); this is a canonical concrete alignment-edge scorer.
    def __init__(self, in_dim, hidden_dim, key, matmul_dtype=jnp.bfloat16,
                 alignment_dtype=jnp.float32, max_graphs_per_block=8):
        self.w = (jax.random.normal(key, (in_dim, hidden_dim), jnp.float32)
                  / jnp.sqrt(jnp.float32(in_dim)))
        self.matmul_dtype = matmul_dtype            # bf16 MXU on v5e/v6e/v7x; f32 for exactness
        self.alignment_dtype = alignment_dtype      # bf16 halves the N^2 writeback
        self.max_graphs_per_block = max_graphs_per_block

    def forward_with_alignment(self, graphs, graph_sizes, graph_adj_matrices):
        xq, xc = graphs
        aq, ac = graph_adj_matrices
        return _forward_pallas(graph_sizes, xq, xc, aq, ac, self.w,
                               with_alignment=True,
                               matmul_dtype=self.matmul_dtype,
                               alignment_dtype=self.alignment_dtype,
                               max_graphs_per_block=self.max_graphs_per_block)

    def forward(self, graphs, graph_sizes, graph_adj_matrices):
        # Template semantics: forward == forward_with_alignment(...)[0].
        # Uses the score-only kernel (skips the N^2 alignment HBM writeback).
        xq, xc = graphs
        aq, ac = graph_adj_matrices
        return _forward_pallas(graph_sizes, xq, xc, aq, ac, self.w,
                               with_alignment=False,
                               matmul_dtype=self.matmul_dtype,
                               alignment_dtype=self.alignment_dtype,
                               max_graphs_per_block=self.max_graphs_per_block)

    def forward_for_alignment(self, graphs, graph_sizes, graph_adj_matrices):
        return self.forward(graphs, graph_sizes, graph_adj_matrices)


# ----------------------------------------------------------------------------
# Pure-JAX reference (same math, f32, exact division) for correctness checks.
# ----------------------------------------------------------------------------
def _reference(graph_sizes, xq, xc, aq, ac, w):
    hq = jnp.einsum('bnd,dh->bnh', xq, w)
    hc = jnp.einsum('bnd,dh->bnh', xc, w)
    s = jnp.einsum('bnh,bmh->bnm', hq, hc)
    N = xq.shape[1]
    idx = jnp.arange(N)
    qmask = idx[None, :, None] < graph_sizes[:, 0, None, None]
    cmask = idx[None, None, :] < graph_sizes[:, 1, None, None]
    pair = qmask & cmask
    s_masked = jnp.where(cmask, s, -1e30)
    m = s_masked.max(-1, keepdims=True)
    e = jnp.exp(s_masked - m)
    p = e / e.sum(-1, keepdims=True)
    p = jnp.where(pair, p, 0.0)
    node = jnp.sum(s * p, axis=(1, 2))
    pacpt = jnp.einsum('bik,bkl,bjl->bij', p, ac, p)
    edge = jnp.sum(aq * pacpt, axis=(1, 2))
    return node + edge, p


if __name__ == "__main__":
    B, N, D, H = 2, 16, 32, 32
    key = jax.random.PRNGKey(0)
    k_w, k_xq, k_xc, k_aq, k_ac = jax.random.split(key, 5)

    # f32 matmuls for the strict check against the f32 reference.
    model = AlignmentEdgeModelPallas(D, H, k_w, matmul_dtype=jnp.float32)

    graph_sizes = jnp.array([[12, 14], [16, 10]], dtype=jnp.int32)     # (n_query, n_corpus)

    idx = jnp.arange(N)
    q_node_mask = (idx[None, :] < graph_sizes[:, 0, None]).astype(jnp.float32)
    c_node_mask = (idx[None, :] < graph_sizes[:, 1, None]).astype(jnp.float32)

    xq = jax.random.normal(k_xq, (B, N, D), jnp.float32) * q_node_mask[:, :, None]
    xc = jax.random.normal(k_xc, (B, N, D), jnp.float32) * c_node_mask[:, :, None]

    def make_adj(k, node_mask):
        a = (jax.random.uniform(k, (B, N, N)) < 0.3).astype(jnp.float32)
        a = jnp.maximum(a, jnp.swapaxes(a, 1, 2))                      # symmetric
        a = a * (1.0 - jnp.eye(N)[None])                               # no self loops
        return a * node_mask[:, :, None] * node_mask[:, None, :]       # zero padding

    aq = make_adj(k_aq, q_node_mask)
    ac = make_adj(k_ac, c_node_mask)

    graphs = (xq, xc)
    adjs = (aq, ac)

    # f32 kernel vs f32 reference.
    scores, alignment = model.forward_with_alignment(graphs, graph_sizes, adjs)
    scores = jax.block_until_ready(scores)
    alignment = jax.block_until_ready(alignment)
    ref_scores, ref_align = _reference(graph_sizes, xq, xc, aq, ac, model.w)
    assert jnp.allclose(scores, ref_scores, rtol=2e-2, atol=2e-2), (scores, ref_scores)
    assert jnp.allclose(alignment, ref_align, rtol=2e-2, atol=2e-2)

    # Score-only fast path matches the full path.
    fwd_scores = jax.block_until_ready(model.forward(graphs, graph_sizes, adjs))
    fa_scores = jax.block_until_ready(model.forward_for_alignment(graphs, graph_sizes, adjs))
    assert jnp.allclose(fwd_scores, scores, rtol=1e-5, atol=1e-5)
    assert jnp.allclose(fa_scores, scores, rtol=1e-5, atol=1e-5)

    # Default (bf16 MXU + bf16 alignment writeback) variant: smoke check.
    model_bf16 = AlignmentEdgeModelPallas(D, H, k_w, alignment_dtype=jnp.bfloat16)
    s_bf16, a_bf16 = model_bf16.forward_with_alignment(graphs, graph_sizes, adjs)
    s_bf16 = jax.block_until_ready(s_bf16)
    a_bf16 = jax.block_until_ready(a_bf16)
    assert jnp.all(jnp.isfinite(s_bf16))
    assert jnp.allclose(s_bf16, ref_scores, rtol=0.25, atol=3.0)
    assert jnp.allclose(a_bf16.astype(jnp.float32), ref_align, rtol=0.1, atol=0.05)

    print("KERNEL_OK")
</pallas_src>

<mosaic_0001>
module attributes {stable_mosaic.version = 11 : i64} {
  func.func @_alignment_edge_kernel(%arg0: i32, %arg1: memref<4xi32, #tpu.memory_space<smem>>, %arg2: memref<1x128x128xf32, #tpu.memory_space<vmem>>, %arg3: memref<1x128x128xf32, #tpu.memory_space<vmem>>, %arg4: memref<1x128x128xbf16, #tpu.memory_space<vmem>>, %arg5: memref<1x128x128xbf16, #tpu.memory_space<vmem>>, %arg6: memref<128x128xf32, #tpu.memory_space<vmem>>, %arg7: memref<1x1x1xf32, #tpu.memory_space<vmem>>, %arg8: memref<1x128x128xf32, #tpu.memory_space<vmem>>) attributes {dimension_semantics = [#tpu.dimension_semantics<parallel>], iteration_bounds = array<i64: 2>, scalar_prefetch = 1 : i64, scratch_operands = 0 : i64, tpu.core_type = #tpu.core_type<tc>, window_params = [{transform_indices = @transform_0, window_bounds = array<i64: 1, 128, 128>}, {transform_indices = @transform_1, window_bounds = array<i64: 1, 128, 128>}, {transform_indices = @transform_2, window_bounds = array<i64: 1, 128, 128>}, {transform_indices = @transform_3, window_bounds = array<i64: 1, 128, 128>}, {pipeline_mode = #tpu.pipeline_mode<synchronous>, transform_indices = @transform_4, window_bounds = array<i64: 128, 128>}, {transform_indices = @transform_5, window_bounds = array<i64: 1, 1, 1>}, {transform_indices = @transform_6, window_bounds = array<i64: 1, 128, 128>}]} {
    %c1_i32 = arith.constant 1 : i32
    %0 = arith.muli %arg0, %c1_i32 : i32
    %c0 = arith.constant 0 : index
    %c0_0 = arith.constant 0 : index
    %1 = vector.load %arg6[%c0, %c0_0] : memref<128x128xf32, #tpu.memory_space<vmem>>, vector<128x128xf32>
    %c0_1 = arith.constant 0 : index
    %c0_2 = arith.constant 0 : index
    %c0_3 = arith.constant 0 : index
    %2 = vector.load %arg2[%c0_1, %c0_2, %c0_3] : memref<1x128x128xf32, #tpu.memory_space<vmem>>, vector<1x128x128xf32>
    %3 = vector.shape_cast %2 : vector<1x128x128xf32> to vector<128x128xf32>
    %cst = arith.constant dense<0.000000e+00> : vector<128x128xf32>
    %4 = tpu.matmul %3, %1, %cst {dimension_numbers = #tpu.dot_dimension_numbers<[1], [0], [0], [1], [0, 0, 1, 1], [], []>} : vector<128x128xf32>, vector<128x128xf32>, vector<128x128xf32> -> vector<128x128xf32>
    %5 = vector.shape_cast %4 : vector<128x128xf32> to vector<1x128x128xf32>
    %c0_4 = arith.constant 0 : index
    %c0_5 = arith.constant 0 : index
    %c0_6 = arith.constant 0 : index
    %6 = vector.load %arg3[%c0_4, %c0_5, %c0_6] : memref<1x128x128xf32, #tpu.memory_space<vmem>>, vector<1x128x128xf32>
    %7 = vector.shape_cast %6 : vector<1x128x128xf32> to vector<128x128xf32>
    %cst_7 = arith.constant dense<0.000000e+00> : vector<128x128xf32>
    %8 = tpu.matmul %7, %1, %cst_7 {dimension_numbers = #tpu.dot_dimension_numbers<[1], [0], [0], [1], [0, 0, 1, 1], [], []>} : vector<128x128xf32>, vector<128x128xf32>, vector<128x128xf32> -> vector<128x128xf32>
    %9 = vector.shape_cast %8 : vector<128x128xf32> to vector<1x128x128xf32>
    "tpu.trace_start"() <{level = 10 : i32, message = "bnh,bmh->bnm"}> : () -> ()
    %cst_8 = arith.constant dense<0.000000e+00> : vector<1x128x128xf32>
    %10 = tpu.matmul %5, %9, %cst_8 {dimension_numbers = #tpu.dot_dimension_numbers<[2], [2], [1], [1], [0, 0, 0, 1, 1, 1], [0], [0]>} : vector<1x128x128xf32>, vector<1x128x128xf32>, vector<1x128x128xf32> -> vector<1x128x128xf32>
    "tpu.trace_stop"() : () -> ()
    %c0_i32 = arith.constant 0 : i32
    %11 = arith.addi %0, %c0_i32 : i32
    %c2_i32 = arith.constant 2 : i32
    %12 = arith.muli %c2_i32, %11 : i32
    %13 = arith.index_cast %12 : i32 to index
    %14 = memref.load %arg1[%13] : memref<4xi32, #tpu.memory_space<smem>>
    %15 = vector.broadcast %14 : i32 to vector<1xi32>
    %16 = vector.shape_cast %15 : vector<1xi32> to vector<1x1x1xi32>
    %c0_i32_9 = arith.constant 0 : i32
    %17 = arith.addi %0, %c0_i32_9 : i32
    %c2_i32_10 = arith.constant 2 : i32
    %18 = arith.muli %c2_i32_10, %17 : i32
    %c1_i32_11 = arith.constant 1 : i32
    %19 = arith.addi %18, %c1_i32_11 : i32
    %20 = arith.index_cast %19 : i32 to index
    %21 = memref.load %arg1[%20] : memref<4xi32, #tpu.memory_space<smem>>
    %22 = vector.broadcast %21 : i32 to vector<1xi32>
    %23 = vector.shape_cast %22 : vector<1xi32> to vector<1x1x1xi32>
    %24 = tpu.iota {dimensions = array<i32: 1>} : vector<1x128x1xi32>
    %25 = tpu.iota {dimensions = array<i32: 2>} : vector<1x1x128xi32>
    %26 = vector.broadcast %16 : vector<1x1x1xi32> to vector<1x128x1xi32>
    %27 = arith.cmpi slt, %24, %26 : vector<1x128x1xi32>
    %28 = vector.broadcast %23 : vector<1x1x1xi32> to vector<1x1x128xi32>
    %29 = arith.cmpi slt, %25, %28 : vector<1x1x128xi32>
    %cst_12 = arith.constant -1.000000e+30 : f32
    %30 = vector.shape_cast %29 : vector<1x1x128xi1> to vector<1x1x128xi1>
    %31 = vector.broadcast %30 : vector<1x1x128xi1> to vector<1x128x128xi1>
    %32 = vector.broadcast %cst_12 : f32 to vector<1x128x128xf32>
    %33 = arith.select %31, %10, %32 : vector<1x128x128xi1>, vector<1x128x128xf32>
    %cst_13 = arith.constant dense<0xFF800000> : vector<1x128xf32>
    %34 = vector.multi_reduction <maximumf>, %33, %cst_13 [2] : vector<1x128x128xf32> to vector<1x128xf32>
    %35 = vector.shape_cast %34 : vector<1x128xf32> to vector<1x128x1xf32>
    %36 = vector.broadcast %35 : vector<1x128x1xf32> to vector<1x128x128xf32>
    %37 = arith.subf %33, %36 : vector<1x128x128xf32>
    %38 = math.exp %37 : vector<1x128x128xf32>
    %cst_14 = arith.constant dense<0.000000e+00> : vector<1x128xf32>
    %39 = vector.multi_reduction <add>, %38, %cst_14 [2] : vector<1x128x128xf32> to vector<1x128xf32>
    %40 = vector.shape_cast %39 : vector<1x128xf32> to vector<1x128x1xf32>
    %41 = tpu.reciprocal %40 {approx = true} : vector<1x128x1xf32> -> vector<1x128x1xf32>
    %42 = vector.broadcast %41 : vector<1x128x1xf32> to vector<1x128x128xf32>
    %43 = arith.mulf %38, %42 : vector<1x128x128xf32>
    %cst_15 = arith.constant 0.000000e+00 : f32
    %44 = vector.shape_cast %29 : vector<1x1x128xi1> to vector<1x1x128xi1>
    %45 = vector.broadcast %44 : vector<1x1x128xi1> to vector<1x128x128xi1>
    %46 = vector.broadcast %cst_15 : f32 to vector<1x128x128xf32>
    %47 = arith.select %45, %43, %46 : vector<1x128x128xi1>, vector<1x128x128xf32>
    %cst_16 = arith.constant 0.000000e+00 : f32
    %48 = vector.shape_cast %27 : vector<1x128x1xi1> to vector<1x128x1xi1>
    %49 = vector.broadcast %48 : vector<1x128x1xi1> to vector<1x128x128xi1>
    %50 = vector.broadcast %cst_16 : f32 to vector<1x128x128xf32>
    %51 = arith.select %49, %47, %50 : vector<1x128x128xi1>, vector<1x128x128xf32>
    %52 = arith.mulf %10, %51 : vector<1x128x128xf32>
    %cst_17 = arith.constant dense<0.000000e+00> : vector<1x128xf32>
    %53 = vector.multi_reduction <add>, %52, %cst_17 [2] : vector<1x128x128xf32> to vector<1x128xf32>
    %54 = vector.shape_cast %53 : vector<1x128xf32> to vector<1x128x1xf32>
    %cst_18 = arith.constant dense<0.000000e+00> : vector<1x1xf32>
    %55 = vector.multi_reduction <add>, %54, %cst_18 [1] : vector<1x128x1xf32> to vector<1x1xf32>
    %56 = vector.shape_cast %55 : vector<1x1xf32> to vector<1x1x1xf32>
    %c0_19 = arith.constant 0 : index
    %c0_20 = arith.constant 0 : index
    %c0_21 = arith.constant 0 : index
    %57 = vector.load %arg4[%c0_19, %c0_20, %c0_21] : memref<1x128x128xbf16, #tpu.memory_space<vmem>>, vector<1x128x128xbf16>
    %58 = arith.extf %57 : vector<1x128x128xbf16> to vector<1x128x128xf32>
    "tpu.trace_start"() <{level = 10 : i32, message = "bij,bjl->bil"}> : () -> ()
    %cst_22 = arith.constant dense<0.000000e+00> : vector<1x128x128xf32>
    %59 = tpu.matmul %58, %51, %cst_22 {dimension_numbers = #tpu.dot_dimension_numbers<[2], [1], [1], [2], [0, 0, 0, 1, 1, 2], [0], [0]>} : vector<1x128x128xf32>, vector<1x128x128xf32>, vector<1x128x128xf32> -> vector<1x128x128xf32>
    "tpu.trace_stop"() : () -> ()
    %c0_23 = arith.constant 0 : index
    %c0_24 = arith.constant 0 : index
    %c0_25 = arith.constant 0 : index
    %60 = vector.load %arg5[%c0_23, %c0_24, %c0_25] : memref<1x128x128xbf16, #tpu.memory_space<vmem>>, vector<1x128x128xbf16>
    %61 = arith.extf %60 : vector<1x128x128xbf16> to vector<1x128x128xf32>
    "tpu.trace_start"() <{level = 10 : i32, message = "bik,bkl->bil"}> : () -> ()
    %cst_26 = arith.constant dense<0.000000e+00> : vector<1x128x128xf32>
    %62 = tpu.matmul %51, %61, %cst_26 {dimension_numbers = #tpu.dot_dimension_numbers<[2], [1], [1], [2], [0, 0, 0, 1, 1, 2], [0], [0]>} : vector<1x128x128xf32>, vector<1x128x128xf32>, vector<1x128x128xf32> -> vector<1x128x128xf32>
    "tpu.trace_stop"() : () -> ()
    %63 = arith.mulf %59, %62 : vector<1x128x128xf32>
    %cst_27 = arith.constant dense<0.000000e+00> : vector<1x128xf32>
    %64 = vector.multi_reduction <add>, %63, %cst_27 [2] : vector<1x128x128xf32> to vector<1x128xf32>
    %65 = vector.shape_cast %64 : vector<1x128xf32> to vector<1x128x1xf32>
    %cst_28 = arith.constant dense<0.000000e+00> : vector<1x1xf32>
    %66 = vector.multi_reduction <add>, %65, %cst_28 [1] : vector<1x128x1xf32> to vector<1x1xf32>
    %67 = vector.shape_cast %66 : vector<1x1xf32> to vector<1x1x1xf32>
    %68 = arith.addf %56, %67 : vector<1x1x1xf32>
    %c0_29 = arith.constant 0 : index
    %c0_30 = arith.constant 0 : index
    %c0_31 = arith.constant 0 : index
    %69 = vector.load %arg7[%c0_29, %c0_30, %c0_31] : memref<1x1x1xf32, #tpu.memory_space<vmem>>, vector<1x1x1xf32>
    tpu.vector_store %arg7[%c0_29, %c0_30, %c0_31], %68 {strides = array<i32>} : memref<1x1x1xf32, #tpu.memory_space<vmem>>, vector<1x1x1xf32>,
    %c0_32 = arith.constant 0 : index
    %c0_33 = arith.constant 0 : index
    %c0_34 = arith.constant 0 : index
    %70 = vector.load %arg8[%c0_32, %c0_33, %c0_34] : memref<1x128x128xf32, #tpu.memory_space<vmem>>, vector<1x128x128xf32>
    tpu.vector_store %arg8[%c0_32, %c0_33, %c0_34], %51 {strides = array<i32>} : memref<1x128x128xf32, #tpu.memory_space<vmem>>, vector<1x128x128xf32>,
    return
  }
  func.func @transform_0(%arg0: i32, %arg1: memref<4xi32, #tpu.memory_space<smem>>) -> (i32, i32, i32) {
    %c0_i32 = arith.constant 0 : i32
    %c0_i32_0 = arith.constant 0 : i32
    %c0_i32_1 = arith.constant 0 : i32
    return %arg0, %c0_i32, %c0_i32_0 : i32, i32, i32
  }
  func.func @transform_1(%arg0: i32, %arg1: memref<4xi32, #tpu.memory_space<smem>>) -> (i32, i32, i32) {
    %c0_i32 = arith.constant 0 : i32
    %c0_i32_0 = arith.constant 0 : i32
    %c0_i32_1 = arith.constant 0 : i32
    return %arg0, %c0_i32, %c0_i32_0 : i32, i32, i32
  }
  func.func @transform_2(%arg0: i32, %arg1: memref<4xi32, #tpu.memory_space<smem>>) -> (i32, i32, i32) {
    %c0_i32 = arith.constant 0 : i32
    %c0_i32_0 = arith.constant 0 : i32
    %c0_i32_1 = arith.constant 0 : i32
    return %arg0, %c0_i32, %c0_i32_0 : i32, i32, i32
  }
  func.func @transform_3(%arg0: i32, %arg1: memref<4xi32, #tpu.memory_space<smem>>) -> (i32, i32, i32) {
    %c0_i32 = arith.constant 0 : i32
    %c0_i32_0 = arith.constant 0 : i32
    %c0_i32_1 = arith.constant 0 : i32
    return %arg0, %c0_i32, %c0_i32_0 : i32, i32, i32
  }
  func.func @transform_4(%arg0: i32, %arg1: memref<4xi32, #tpu.memory_space<smem>>) -> (i32, i32) {
    %c0_i32 = arith.constant 0 : i32
    %c0_i32_0 = arith.constant 0 : i32
    %c0_i32_1 = arith.constant 0 : i32
    return %c0_i32, %c0_i32_0 : i32, i32
  }
  func.func @transform_5(%arg0: i32, %arg1: memref<4xi32, #tpu.memory_space<smem>>) -> (i32, i32, i32) {
    %c0_i32 = arith.constant 0 : i32
    %c0_i32_0 = arith.constant 0 : i32
    %c0_i32_1 = arith.constant 0 : i32
    return %arg0, %c0_i32, %c0_i32_0 : i32, i32, i32
  }
  func.func @transform_6(%arg0: i32, %arg1: memref<4xi32, #tpu.memory_space<smem>>) -> (i32, i32, i32) {
    %c0_i32 = arith.constant 0 : i32
    %c0_i32_0 = arith.constant 0 : i32
    %c0_i32_1 = arith.constant 0 : i32
    return %arg0, %c0_i32, %c0_i32_0 : i32, i32, i32
  }
}

</mosaic_0001>

<llo_original>
// kernel: tpu_custom_call.1
$region0: #{tpu_custom_call.1}
  #allocation0 [shape = 'u32[]', space=smem, size = 0x4, offset = 0x4, fixed_abs, tag = 'smem constant byte address 0x4 - core index']
  #allocation1 [shape = 'u32[144,128]{1,0:T(1,128)}', space=vmem, size = 0x12000, scoped, tag = 'internal scratch']
  #allocation2 [shape = 's32[1]{0}', space=sflag, size = 0x4, scoped, tag = 'scoped memory for tpu_custom_call.1']
  #allocation3 [shape = 'u8[512]{0}', space=smem, size = 0x200, scoped, tag = 'prefetched SMEM operand 0']
  %s0 = inlined_call_operand.hbm [shape: s32[4], index: 0, kind: input, shape index: {}]
  %s1 = inlined_call_operand.hbm [shape: f32[2,128,128], index: 1, kind: input, shape index: {}]
  %s2 = inlined_call_operand.hbm [shape: f32[2,128,128], index: 2, kind: input, shape index: {}]
  %s3 = inlined_call_operand.hbm [shape: bf16[2,128,128], index: 3, kind: input, shape index: {}]
  %s4 = inlined_call_operand.hbm [shape: bf16[2,128,128], index: 4, kind: input, shape index: {}]
  %s5 = inlined_call_operand.hbm [shape: f32[128,128], index: 5, kind: input, shape index: {}]
  %s6 = inlined_call_operand.vmem [shape: f32[2,1,1], index: 6, kind: output, shape index: {0}]
  %s7 = inlined_call_operand.hbm [shape: f32[2,128,128], index: 7, kind: output, shape index: {1}]
  %8 = xla_tuple %s6, %s7
  %s9 = sld [smem:[#allocation0]]
  $region81: #{tpu_custom_call.1} parent=0
    _
  %s11 = ssub.s32 1, %s9
  %s12 = scalar_select 0, %s11, %s9
  %14 = dma.hbm_to_smem %s0, 16, [#allocation3], [#allocation2]
  %15 = dma.done [#allocation2], 16
  %16 = sfence
  $region1: #{tpu_custom_call.1} parent=0
    #allocation4 [shape = 'u8[131072]{0}', space=vmem, size = 0x20000, scoped, tag = 'input window, operand 1']
    #allocation5 [shape = 's32[2]{0}', space=sflag, size = 0x8, scoped, tag = 'scoped memory for tpu_custom_call.1']
    #allocation6 [shape = 's32[2]{0}', space=sflag, size = 0x8, scoped, tag = 'scoped memory for tpu_custom_call.1']
    #allocation7 [shape = 'u8[131072]{0}', space=vmem, size = 0x20000, scoped, tag = 'input window, operand 2']
    #allocation8 [shape = 's32[2]{0}', space=sflag, size = 0x8, scoped, tag = 'scoped memory for tpu_custom_call.1']
    #allocation9 [shape = 'u8[65536]{0}', space=vmem, size = 0x10000, scoped, tag = 'input window, operand 3']
    #allocation10 [shape = 'u8[65536]{0}', space=vmem, size = 0x10000, scoped, tag = 'input window, operand 4']
    #allocation11 [shape = 's32[2]{0}', space=sflag, size = 0x8, scoped, tag = 'scoped memory for tpu_custom_call.1']
    #allocation12 [shape = 'u8[65536]{0}', space=vmem, size = 0x10000, scoped, tag = 'input window, operand 5, single buffered']
    #allocation13 [shape = 'u8[131072]{0}', space=vmem, size = 0x20000, scoped, tag = 'output window, operand 1']
    %17 = vsyncpa [#allocation5], 0
    %s18 = scalar_lea.sflag [#allocation5], 1
    %19 = vsyncpa %s18, 0
    %20 = vsyncpa [#allocation8], 0
    %s21 = scalar_lea.sflag [#allocation8], 1
    %22 = vsyncpa %s21, 0
    %23 = vsyncpa [#allocation11], 0
    %s24 = scalar_lea.sflag [#allocation11], 1
    %25 = vsyncpa %s24, 0
    %26 = vsyncpa [#allocation6], 0
    %s27 = scalar_lea.sflag [#allocation6], 1
    %28 = vsyncpa %s27, 0
    loop: start=0, step=1, limit=4
    $region2: #{tpu_custom_call.1} parent=1 // loop_pre_header
      _
    $region3: #{tpu_custom_call.1} parent=1 // loop_header
      %s30 = sphi 0, %s34
      %p31 = scmp.ge.s32.totalorder %s30, 4
      %s40 = sphi 0, %s42
      %s43 = sphi 0, %s40
      %s44 = sphi 0, %s43
      %s60 = sphi 0, %s44
      %s66 = sphi 0, %s68
      %s69 = sphi 0, %s66
      %s70 = sphi 0, %s69
      %s86 = sphi 0, %s70
      %s92 = sphi 0, %s94
      %s95 = sphi 0, %s92
      %s96 = sphi 0, %s95
      %s112 = sphi 0, %s96
      %s118 = sphi 0, %s120
      %s121 = sphi 0, %s118
      %s122 = sphi 0, %s121
      %s138 = sphi 0, %s122
      %s142 = sphi 0, %s142
      %s144 = sphi 0, %s142
      %s145 = sphi 0, %s144
      %s159 = sphi 0, %s145
      %s165 = sphi 0, %s167
      %s168 = sphi 0, %s165
      %s169 = sphi 0, %s168
      %s185 = sphi 0, %s169
      %s191 = sphi 0, %s193
      %s194 = sphi 0, %s191
      %s195 = sphi 0, %s194
      %s211 = sphi 0, %s195
    $region4: #{tpu_custom_call.1} parent=1 // loop_header_branch
      %33 = sbr.rel (%p31) target = $region8
    $region5: #{tpu_custom_call.1} parent=1 // loop_body
      %s35 = ssub.s32 %s30, 1
      %s36 = ssub.s32 %s30, 2
      %s37 = sadd.s32 %s30, 1
      %s38 = ssub.s32 %s30, %s37
      %p39 = scmp.eq.s32.totalorder %s38, 0
      %s41 = sadd.s32 %s40, 1
      %s42 = scalar_select %p39, %s40, %s41
      %p45 = pneg %p39
      %p46 = scmp.eq.s32.totalorder %s30, 1
      %p47 = por %p45, %p46
      %p48 = scmp.ne.s32.totalorder %s40, %s43
      %p49 = scmp.eq.s32.totalorder %s30, 0
      %p50 = por %p48, %p49
      %p51 = scmp.ne.s32.totalorder %s40, %s43
      %p52 = scmp.eq.s32.totalorder %s35, 1
      %p53 = por %p51, %p52
      %p54 = scmp.ne.s32.totalorder %s43, %s44
      %p55 = scmp.eq.s32.totalorder %s35, 0
      %p56 = por %p54, %p55
      %p57 = scmp.ne.s32.totalorder %s43, %s44
      %p58 = scmp.eq.s32.totalorder %s36, 1
      %p59 = por %p57, %p58
      %p61 = scmp.ne.s32.totalorder %s44, %s60
      %p62 = scmp.eq.s32.totalorder %s36, 0
      %p63 = por %p61, %p62
      %s64 = ssub.s32 %s30, %s37
      %p65 = scmp.eq.s32.totalorder %s64, 0
      %s67 = sadd.s32 %s66, 1
      %s68 = scalar_select %p65, %s66, %s67
      %p71 = pneg %p65
      %p72 = scmp.eq.s32.totalorder %s30, 1
      %p73 = por %p71, %p72
      %p74 = scmp.ne.s32.totalorder %s66, %s69
      %p75 = scmp.eq.s32.totalorder %s30, 0
      %p76 = por %p74, %p75
      %p77 = scmp.ne.s32.totalorder %s66, %s69
      %p78 = scmp.eq.s32.totalorder %s35, 1
      %p79 = por %p77, %p78
      %p80 = scmp.ne.s32.totalorder %s69, %s70
      %p81 = scmp.eq.s32.totalorder %s35, 0
      %p82 = por %p80, %p81
      %p83 = scmp.ne.s32.totalorder %s69, %s70
      %p84 = scmp.eq.s32.totalorder %s36, 1
      %p85 = por %p83, %p84
      %p87 = scmp.ne.s32.totalorder %s70, %s86
      %p88 = scmp.eq.s32.totalorder %s36, 0
      %p89 = por %p87, %p88
      %s90 = ssub.s32 %s30, %s37
      %p91 = scmp.eq.s32.totalorder %s90, 0
      %s93 = sadd.s32 %s92, 1
      %s94 = scalar_select %p91, %s92, %s93
      %p97 = pneg %p91
      %p98 = scmp.eq.s32.totalorder %s30, 1
      %p99 = por %p97, %p98
      %p100 = scmp.ne.s32.totalorder %s92, %s95
      %p101 = scmp.eq.s32.totalorder %s30, 0
      %p102 = por %p100, %p101
      %p103 = scmp.ne.s32.totalorder %s92, %s95
      %p104 = scmp.eq.s32.totalorder %s35, 1
      %p105 = por %p103, %p104
      %p106 = scmp.ne.s32.totalorder %s95, %s96
      %p107 = scmp.eq.s32.totalorder %s35, 0
      %p108 = por %p106, %p107
      %p109 = scmp.ne.s32.totalorder %s95, %s96
      %p110 = scmp.eq.s32.totalorder %s36, 1
      %p111 = por %p109, %p110
      %p113 = scmp.ne.s32.totalorder %s96, %s112
      %p114 = scmp.eq.s32.totalorder %s36, 0
      %p115 = por %p113, %p114
      %s116 = ssub.s32 %s30, %s37
      %p117 = scmp.eq.s32.totalorder %s116, 0
      %s119 = sadd.s32 %s118, 1
      %s120 = scalar_select %p117, %s118, %s119
      %p123 = pneg %p117
      %p124 = scmp.eq.s32.totalorder %s30, 1
      %p125 = por %p123, %p124
      %p126 = scmp.ne.s32.totalorder %s118, %s121
      %p127 = scmp.eq.s32.totalorder %s30, 0
      %p128 = por %p126, %p127
      %p129 = scmp.ne.s32.totalorder %s118, %s121
      %p130 = scmp.eq.s32.totalorder %s35, 1
      %p131 = por %p129, %p130
      %p132 = scmp.ne.s32.totalorder %s121, %s122
      %p133 = scmp.eq.s32.totalorder %s35, 0
      %p134 = por %p132, %p133
      %p135 = scmp.ne.s32.totalorder %s121, %s122
      %p136 = scmp.eq.s32.totalorder %s36, 1
      %p137 = por %p135, %p136
      %p139 = scmp.ne.s32.totalorder %s122, %s138
      %p140 = scmp.eq.s32.totalorder %s36, 0
      %p141 = por %p139, %p140
      %s143 = sadd.s32 %s142, 1
      %p146 = scmp.eq.s32.totalorder %s30, 1
      %p147 = scmp.ne.s32.totalorder %s142, %s144
      %p148 = scmp.eq.s32.totalorder %s30, 0
      %p149 = por %p147, %p148
      %p150 = scmp.ne.s32.totalorder %s142, %s144
      %p151 = scmp.eq.s32.totalorder %s35, 1
      %p152 = por %p150, %p151
      %p153 = scmp.ne.s32.totalorder %s144, %s145
      %p154 = scmp.eq.s32.totalorder %s35, 0
      %p155 = por %p153, %p154
      %p156 = scmp.ne.s32.totalorder %s144, %s145
      %p157 = scmp.eq.s32.totalorder %s36, 1
      %p158 = por %p156, %p157
      %p160 = scmp.ne.s32.totalorder %s145, %s159
      %p161 = scmp.eq.s32.totalorder %s36, 0
      %p162 = por %p160, %p161
      %s163 = ssub.s32 %s30, %s37
      %p164 = scmp.eq.s32.totalorder %s163, 0
      %s166 = sadd.s32 %s165, 1
      %s167 = scalar_select %p164, %s165, %s166
      %p170 = pneg %p164
      %p171 = scmp.eq.s32.totalorder %s30, 1
      %p172 = por %p170, %p171
      %p173 = scmp.ne.s32.totalorder %s165, %s168
      %p174 = scmp.eq.s32.totalorder %s30, 0
      %p175 = por %p173, %p174
      %p176 = scmp.ne.s32.totalorder %s165, %s168
      %p177 = scmp.eq.s32.totalorder %s35, 1
      %p178 = por %p176, %p177
      %p179 = scmp.ne.s32.totalorder %s168, %s169
      %p180 = scmp.eq.s32.totalorder %s35, 0
      %p181 = por %p179, %p180
      %p182 = scmp.ne.s32.totalorder %s168, %s169
      %p183 = scmp.eq.s32.totalorder %s36, 1
      %p184 = por %p182, %p183
      %p186 = scmp.ne.s32.totalorder %s169, %s185
      %p187 = scmp.eq.s32.totalorder %s36, 0
      %p188 = por %p186, %p187
      %s189 = ssub.s32 %s30, %s37
      %p190 = scmp.eq.s32.totalorder %s189, 0
      %s192 = sadd.s32 %s191, 1
      %s193 = scalar_select %p190, %s191, %s192
      %p196 = pneg %p190
      %p197 = scmp.eq.s32.totalorder %s30, 1
      %p198 = por %p196, %p197
      %p199 = scmp.ne.s32.totalorder %s191, %s194
      %p200 = scmp.eq.s32.totalorder %s30, 0
      %p201 = por %p199, %p200
      %p202 = scmp.ne.s32.totalorder %s191, %s194
      %p203 = scmp.eq.s32.totalorder %s35, 1
      %p204 = por %p202, %p203
      %p205 = scmp.ne.s32.totalorder %s194, %s195
      %p206 = scmp.eq.s32.totalorder %s35, 0
      %p207 = por %p205, %p206
      %p208 = scmp.ne.s32.totalorder %s194, %s195
      %p209 = scmp.eq.s32.totalorder %s36, 1
      %p210 = por %p208, %p209
      %p212 = scmp.ne.s32.totalorder %s195, %s211
      %p213 = scmp.eq.s32.totalorder %s36, 0
      %p214 = por %p212, %p213
      %p215 = scmp.le.s32.totalorder 1, %s30
      %p216 = scmp.lt.s32.totalorder %s30, 3
      %p217 = pnand %p215, %p216
      %p218 = pneg %p217
      // Predicated region
      $region9: #{tpu_custom_call.1} parent=5 // pred_check
        _
      $region10: #{tpu_custom_call.1} parent=5 // pred_check_branch
        %220 = sbr.rel (%p217) target = $region12
      $region11: #{tpu_custom_call.1} parent=5 // pred_region
        %s221 = ssub.s32 %s30, 1
        // Predicated region
        $region13: #{tpu_custom_call.1} parent=11 // pred_check
          %p222 = pneg %p155
        $region14: #{tpu_custom_call.1} parent=11 // pred_check_branch
          %224 = sbr.rel (%p222) target = $region16
        $region15: #{tpu_custom_call.1} parent=11 // pred_region
          %s226 = ssub.s32 2048, 2048
          %227 = vsyncadd [#allocation11], %s226
          %s228 = sshll.u32 [#allocation12], 4
          %s229 = int_to_ptr.vmem [resolvable:$true] %s228
          %234 = dma.hbm_to_vmem [thread:$0]  %s5, 2048, %s229, [#allocation11], 128, 128, 8
        $region16: #{tpu_custom_call.1} parent=11 // pred_fallthru
          _
      $region12: #{tpu_custom_call.1} parent=5 // pred_fallthru
        _
      %p235 = scmp.lt.s32.totalorder %s30, 2
      // Predicated region
      $region17: #{tpu_custom_call.1} parent=5 // pred_check
        %p236 = pneg %p235
      $region18: #{tpu_custom_call.1} parent=5 // pred_check_branch
        %238 = sbr.rel (%p236) target = $region20
      $region19: #{tpu_custom_call.1} parent=5 // pred_region
        // Predicated region
        $region21: #{tpu_custom_call.1} parent=19 // pred_check
          %p239 = pneg %p50
        $region22: #{tpu_custom_call.1} parent=19 // pred_check_branch
          %241 = sbr.rel (%p239) target = $region24
        $region23: #{tpu_custom_call.1} parent=19 // pred_region
          %s242 = sand.u32 %s40, 1
          %s243 = scalar_lea.sflag [#allocation5], %s242
          %s244 = sand.u32 %s40, 1
          %s245 = smul.addr %s244, 128
          %s246 = scalar_lea.vmem [#allocation4], %s245
          %s248 = ssub.s32 2048, 2048
          %249 = vsyncadd %s243, %s248
          %s250 = smul.addr %s30, 16
          %s251 = smul.addr %s250, 128
          %s252 = scalar_lea.hbm %s1, %s251
          %s253 = sshll.u32 %s246, 4
          %s254 = int_to_ptr.vmem [resolvable:$true] %s253
          %259 = dma.hbm_to_vmem [thread:$0]  %s252, 2048, %s254, %s243, 128, 128, 8
        $region24: #{tpu_custom_call.1} parent=19 // pred_fallthru
          _
        // Predicated region
        $region25: #{tpu_custom_call.1} parent=19 // pred_check
          %p260 = pneg %p76
        $region26: #{tpu_custom_call.1} parent=19 // pred_check_branch
          %262 = sbr.rel (%p260) target = $region28
        $region27: #{tpu_custom_call.1} parent=19 // pred_region
          %s263 = sand.u32 %s30, 1
          %s264 = scalar_lea.sflag [#allocation8], %s263
          %s265 = sand.u32 %s66, 1
          %s266 = smul.addr %s265, 128
          %s267 = scalar_lea.vmem [#allocation7], %s266
          %s269 = ssub.s32 2048, 2048
          %270 = vsyncadd %s264, %s269
          %s271 = smul.addr %s30, 16
          %s272 = smul.addr %s271, 128
          %s273 = scalar_lea.hbm %s2, %s272
          %s274 = sshll.u32 %s267, 4
          %s275 = int_to_ptr.vmem [resolvable:$true] %s274
          %280 = dma.hbm_to_vmem [thread:$0]  %s273, 2048, %s275, %s264, 128, 128, 8
        $region28: #{tpu_custom_call.1} parent=19 // pred_fallthru
          _
        // Predicated region
        $region29: #{tpu_custom_call.1} parent=19 // pred_check
          %p281 = pneg %p102
        $region30: #{tpu_custom_call.1} parent=19 // pred_check_branch
          %283 = sbr.rel (%p281) target = $region32
        $region31: #{tpu_custom_call.1} parent=19 // pred_region
          %s284 = sand.u32 %s30, 1
          %s285 = scalar_lea.sflag [#allocation8], %s284
          %s286 = sand.u32 %s92, 1
          %s287 = smul.addr %s286, 64
          %s288 = scalar_lea.vmem [#allocation9], %s287
          %s290 = ssub.s32 1024, 1024
          %291 = vsyncadd %s285, %s290
          %s292 = smul.addr %s30, 16
          %s293 = smul.addr %s292, 64
          %s294 = scalar_lea.hbm %s3, %s293
          %s295 = sshll.u32 %s288, 4
          %s296 = int_to_ptr.vmem [resolvable:$true] %s295
          %301 = dma.hbm_to_vmem [thread:$0]  %s294, 1024, %s296, %s285, 64, 64, 4
        $region32: #{tpu_custom_call.1} parent=19 // pred_fallthru
          _
        // Predicated region
        $region33: #{tpu_custom_call.1} parent=19 // pred_check
          %p302 = pneg %p128
        $region34: #{tpu_custom_call.1} parent=19 // pred_check_branch
          %304 = sbr.rel (%p302) target = $region36
        $region35: #{tpu_custom_call.1} parent=19 // pred_region
          %s305 = sand.u32 %s30, 1
          %s306 = scalar_lea.sflag [#allocation11], %s305
          %s307 = sand.u32 %s118, 1
          %s308 = smul.addr %s307, 64
          %s309 = scalar_lea.vmem [#allocation10], %s308
          %s311 = ssub.s32 1024, 1024
          %312 = vsyncadd %s306, %s311
          %s313 = smul.addr %s30, 16
          %s314 = smul.addr %s313, 64
          %s315 = scalar_lea.hbm %s4, %s314
          %s316 = sshll.u32 %s309, 4
          %s317 = int_to_ptr.vmem [resolvable:$true] %s316
          %322 = dma.hbm_to_vmem [thread:$0]  %s315, 1024, %s317, %s306, 64, 64, 4
        $region36: #{tpu_custom_call.1} parent=19 // pred_fallthru
          _
      $region20: #{tpu_custom_call.1} parent=5 // pred_fallthru
        _
      %p323 = scmp.le.s32.totalorder 1, %s30
      %p324 = scmp.lt.s32.totalorder %s30, 3
      %p325 = pnand %p323, %p324
      %p326 = pneg %p325
      // Predicated region
      $region37: #{tpu_custom_call.1} parent=5 // pred_check
        _
      $region38: #{tpu_custom_call.1} parent=5 // pred_check_branch
        %328 = sbr.rel (%p325) target = $region40
      $region39: #{tpu_custom_call.1} parent=5 // pred_region
        %s329 = ssub.s32 %s30, 1
        %s330 = sand.u32 %s43, 1
        %s331 = scalar_lea.sflag [#allocation5], %s330
        %s332 = sand.u32 %s43, 1
        %s333 = smul.addr %s332, 128
        %s334 = scalar_lea.vmem [#allocation4], %s333
        // Predicated region
        $region41: #{tpu_custom_call.1} parent=39 // pred_check
          %p335 = pneg %p56
        $region42: #{tpu_custom_call.1} parent=39 // pred_check_branch
          %337 = sbr.rel (%p335) target = $region44
        $region43: #{tpu_custom_call.1} parent=39 // pred_region
          %338 = dma.done %s331, 2048
        $region44: #{tpu_custom_call.1} parent=39 // pred_fallthru
          _
        %s339 = sand.u32 %s35, 1
        %s340 = scalar_lea.sflag [#allocation8], %s339
        %s341 = sand.u32 %s69, 1
        %s342 = smul.addr %s341, 128
        %s343 = scalar_lea.vmem [#allocation7], %s342
        // Predicated region
        $region45: #{tpu_custom_call.1} parent=39 // pred_check
          %p344 = pneg %p82
        $region46: #{tpu_custom_call.1} parent=39 // pred_check_branch
          %346 = sbr.rel (%p344) target = $region48
        $region47: #{tpu_custom_call.1} parent=39 // pred_region
          %347 = dma.done %s340, 2048
        $region48: #{tpu_custom_call.1} parent=39 // pred_fallthru
          _
        %s348 = sand.u32 %s35, 1
        %s349 = scalar_lea.sflag [#allocation8], %s348
        %s350 = sand.u32 %s95, 1
        %s351 = smul.addr %s350, 64
        %s352 = scalar_lea.vmem [#allocation9], %s351
        // Predicated region
        $region49: #{tpu_custom_call.1} parent=39 // pred_check
          %p353 = pneg %p108
        $region50: #{tpu_custom_call.1} parent=39 // pred_check_branch
          %355 = sbr.rel (%p353) target = $region52
        $region51: #{tpu_custom_call.1} parent=39 // pred_region
          %356 = dma.done %s349, 1024
        $region52: #{tpu_custom_call.1} parent=39 // pred_fallthru
          _
        %s357 = sand.u32 %s35, 1
        %s358 = scalar_lea.sflag [#allocation11], %s357
        %s359 = sand.u32 %s121, 1
        %s360 = smul.addr %s359, 64
        %s361 = scalar_lea.vmem [#allocation10], %s360
        // Predicated region
        $region53: #{tpu_custom_call.1} parent=39 // pred_check
          %p362 = pneg %p134
        $region54: #{tpu_custom_call.1} parent=39 // pred_check_branch
          %364 = sbr.rel (%p362) target = $region56
        $region55: #{tpu_custom_call.1} parent=39 // pred_region
          %365 = dma.done %s358, 1024
        $region56: #{tpu_custom_call.1} parent=39 // pred_fallthru
          _
        // Predicated region
        $region57: #{tpu_custom_call.1} parent=39 // pred_check
          %p366 = pneg %p155
        $region58: #{tpu_custom_call.1} parent=39 // pred_check_branch
          %368 = sbr.rel (%p366) target = $region60
        $region59: #{tpu_custom_call.1} parent=39 // pred_region
          %369 = dma.done [#allocation11], 2048
        $region60: #{tpu_custom_call.1} parent=39 // pred_fallthru
          _
        %s370 = sand.u32 %s43, 1
        %s371 = scalar_lea.sflag [#allocation5], %s370
        %s372 = sand.u32 %s43, 1
        %s373 = smul.addr %s372, 128
        %s374 = scalar_lea.vmem [#allocation4], %s373
        %p375 = pneg %p56
        %p376 = pneg %p53
        %s377 = sand.u32 %s35, 1
        %s378 = scalar_lea.sflag [#allocation8], %s377
        %s379 = sand.u32 %s69, 1
        %s380 = smul.addr %s379, 128
        %s381 = scalar_lea.vmem [#allocation7], %s380
        %p382 = pneg %p82
        %p383 = pneg %p79
        %s384 = sand.u32 %s35, 1
        %s385 = scalar_lea.sflag [#allocation8], %s384
        %s386 = sand.u32 %s95, 1
        %s387 = smul.addr %s386, 64
        %s388 = scalar_lea.vmem [#allocation9], %s387
        %p389 = pneg %p108
        %p390 = pneg %p105
        %s391 = sand.u32 %s35, 1
        %s392 = scalar_lea.sflag [#allocation11], %s391
        %s393 = sand.u32 %s121, 1
        %s394 = smul.addr %s393, 64
        %s395 = scalar_lea.vmem [#allocation10], %s394
        %p396 = pneg %p134
        %p397 = pneg %p131
        %p398 = pneg %p155
        %p399 = pneg %p152
        %p400 = pneg %p181
        %p401 = pneg %p178
        %p402 = scmp.lt.s32.totalorder %s35, 1
        %s403 = scalar_select %p402, %s35, 1
        %s404 = scalar_lea.vmem %s6, %s403
        %p405 = pneg %p207
        %p406 = pneg %p204
        %s407 = sand.u32 %s194, 1
        %s408 = scalar_lea.sflag [#allocation6], %s407
        %s409 = sand.u32 %s194, 1
        %s410 = smul.addr %s409, 128
        %s411 = scalar_lea.vmem [#allocation13], %s410
        %p412 = scmp.lt.s32.totalorder %s35, 1
        %s413 = scalar_select %p412, %s35, 1
        %s414 = scalar_lea.vmem %s6, %s413
        %v415 = vld [vmem:[#allocation12] sm:$0xff]
        %v416 = vld [vmem:[#allocation12 + $0x8] sm:$0xff]
        %v417 = vld [vmem:[#allocation12 + $0x10] sm:$0xff]
        %v418 = vld [vmem:[#allocation12 + $0x18] sm:$0xff]
        %v419 = vld [vmem:[#allocation12 + $0x20] sm:$0xff]
        %v420 = vld [vmem:[#allocation12 + $0x28] sm:$0xff]
        %v421 = vld [vmem:[#allocation12 + $0x30] sm:$0xff]
        %v422 = vld [vmem:[#allocation12 + $0x38] sm:$0xff]
        %v423 = vld [vmem:[#allocation12 + $0x40] sm:$0xff]
        %v424 = vld [vmem:[#allocation12 + $0x48] sm:$0xff]
        %v425 = vld [vmem:[#allocation12 + $0x50] sm:$0xff]
        %v426 = vld [vmem:[#allocation12 + $0x58] sm:$0xff]
        %v427 = vld [vmem:[#allocation12 + $0x60] sm:$0xff]
        %v428 = vld [vmem:[#allocation12 + $0x68] sm:$0xff]
        %v429 = vld [vmem:[#allocation12 + $0x70] sm:$0xff]
        %v430 = vld [vmem:[#allocation12 + $0x78] sm:$0xff]
        %v431 = vld [vmem:[%s334] sm:$0xff]
        %v432 = vld [vmem:[%s334 + $0x8] sm:$0xff]
        %v433 = vld [vmem:[%s334 + $0x10] sm:$0xff]
        %v434 = vld [vmem:[%s334 + $0x18] sm:$0xff]
        %v435 = vld [vmem:[%s334 + $0x20] sm:$0xff]
        %v436 = vld [vmem:[%s334 + $0x28] sm:$0xff]
        %v437 = vld [vmem:[%s334 + $0x30] sm:$0xff]
        %v438 = vld [vmem:[%s334 + $0x38] sm:$0xff]
        %v439 = vld [vmem:[%s334 + $0x40] sm:$0xff]
        %v440 = vld [vmem:[%s334 + $0x48] sm:$0xff]
        %v441 = vld [vmem:[%s334 + $0x50] sm:$0xff]
        %v442 = vld [vmem:[%s334 + $0x58] sm:$0xff]
        %v443 = vld [vmem:[%s334 + $0x60] sm:$0xff]
        %v444 = vld [vmem:[%s334 + $0x68] sm:$0xff]
        %v445 = vld [vmem:[%s334 + $0x70] sm:$0xff]
        %v446 = vld [vmem:[%s334 + $0x78] sm:$0xff]
        %447 = vmatprep.subr.mxu0 0.0
        %448 = vmatpush1.msra.mxu0 %v415
        %449 = vmatprep.subr.mxu0 0.0
        %450 = vmatpush1.msra.mxu0 %v416
        %451 = vmatprep.subr.mxu0 0.0
        %452 = vmatpush1.msra.mxu0 %v417
        %453 = vmatprep.subr.mxu0 0.0
        %454 = vmatpush1.msra.mxu0 %v418
        %455 = vmatprep.subr.mxu0 0.0
        %456 = vmatpush1.msra.mxu0 %v419
        %457 = vmatprep.subr.mxu0 0.0
        %458 = vmatpush1.msra.mxu0 %v420
        %459 = vmatprep.subr.mxu0 0.0
        %460 = vmatpush1.msra.mxu0 %v421
        %461 = vmatprep.subr.mxu0 0.0
        %462 = vmatpush1.msra.mxu0 %v422
        %463 = vmatprep.subr.mxu0 0.0
        %464 = vmatpush1.msra.mxu0 %v423
        %465 = vmatprep.subr.mxu0 0.0
        %466 = vmatpush1.msra.mxu0 %v424
        %467 = vmatprep.subr.mxu0 0.0
        %468 = vmatpush1.msra.mxu0 %v425
        %469 = vmatprep.subr.mxu0 0.0
        %470 = vmatpush1.msra.mxu0 %v426
        %471 = vmatprep.subr.mxu0 0.0
        %472 = vmatpush1.msra.mxu0 %v427
        %473 = vmatprep.subr.mxu0 0.0
        %474 = vmatpush1.msra.mxu0 %v428
        %475 = vmatprep.subr.mxu0 0.0
        %476 = vmatpush1.msra.mxu0 %v429
        %477 = vmatprep.subr.mxu0 0.0
        %478 = vmatpush1.msra.mxu0 %v430
        %479 = vmatprep.subr.mxu0 0.0
        %480 = vmatpush1.msra.mxu0 0.0
        %481 = vmatprep.subr.mxu0 0.0
        %482 = vmatpush1.msra.mxu0 0.0
        %483 = vmatprep.subr.mxu0 0.0
        %484 = vmatpush1.msra.mxu0 0.0
        %485 = vmatprep.subr.mxu0 0.0
        %486 = vmatpush1.msra.mxu0 0.0
        %487 = vmatprep.subr.mxu0 0.0
        %488 = vmatpush1.msra.mxu0 0.0
        %489 = vmatprep.subr.mxu0 0.0
        %490 = vmatpush1.msra.mxu0 0.0
        %491 = vmatprep.subr.mxu0 0.0
        %492 = vmatpush1.msra.mxu0 0.0
        %493 = vmatprep.subr.mxu0 0.0
        %494 = vmatpush1.msra.mxu0 0.0
        %495 = vmatprep.subr.mxu0 0.0
        %496 = vmatpush1.msra.mxu0 0.0
        %497 = vmatprep.subr.mxu0 0.0
        %498 = vmatpush1.msra.mxu0 0.0
        %499 = vmatprep.subr.mxu0 0.0
        %500 = vmatpush1.msra.mxu0 0.0
        %501 = vmatprep.subr.mxu0 0.0
        %502 = vmatpush1.msra.mxu0 0.0
        %503 = vmatprep.subr.mxu0 0.0
        %504 = vmatpush1.msra.mxu0 0.0
        %505 = vmatprep.subr.mxu0 0.0
        %506 = vmatpush1.msra.mxu0 0.0
        %507 = vmatprep.subr.mxu0 0.0
        %508 = vmatpush1.msra.mxu0 0.0
        %509 = vmatprep.subr.mxu0 0.0
        %510 = vmatpush1.msra.mxu0 0.0
        %511 = vmatprep.mubr.f32.mxu0 0.0
        %512 = vmatmul.mubr.f32.gmra.mrb[0].mxu0 %v431
        %v513 = vpop.f32.mrb[0].mxu0
        %v514 = vadd.f32 0.0, %v513
        %v515 = vpop.f32.mrb[0].mxu0
        %516 = vmatprep.mubr.f32.mxu0 0.0
        %517 = vmatmul.mubr.f32.gmra.mrb[0].mxu0 %v432
        %v518 = vpop.f32.mrb[0].mxu0
        %v519 = vadd.f32 0.0, %v518
        %v520 = vpop.f32.mrb[0].mxu0
        %521 = vmatprep.mubr.f32.mxu0 0.0
        %522 = vmatmul.mubr.f32.gmra.mrb[0].mxu0 %v433
        %v523 = vpop.f32.mrb[0].mxu0
        %v524 = vadd.f32 0.0, %v523
        %v525 = vpop.f32.mrb[0].mxu0
        %526 = vmatprep.mubr.f32.mxu0 0.0
        %527 = vmatmul.mubr.f32.gmra.mrb[0].mxu0 %v434
        %v528 = vpop.f32.mrb[0].mxu0
        %v529 = vadd.f32 0.0, %v528
        %v530 = vpop.f32.mrb[0].mxu0
        %531 = vmatprep.mubr.f32.mxu0 0.0
        %532 = vmatmul.mubr.f32.gmra.mrb[0].mxu0 %v435
        %v533 = vpop.f32.mrb[0].mxu0
        %v534 = vadd.f32 0.0, %v533
        %v535 = vpop.f32.mrb[0].mxu0
        %536 = vmatprep.mubr.f32.mxu0 0.0
        %537 = vmatmul.mubr.f32.gmra.mrb[0].mxu0 %v436
        %v538 = vpop.f32.mrb[0].mxu0
        %v539 = vadd.f32 0.0, %v538
        %v540 = vpop.f32.mrb[0].mxu0
        %541 = vmatprep.mubr.f32.mxu0 0.0
        %542 = vmatmul.mubr.f32.gmra.mrb[0].mxu0 %v437
        %v543 = vpop.f32.mrb[0].mxu0
        %v544 = vadd.f32 0.0, %v543
        %v545 = vpop.f32.mrb[0].mxu0
        %546 = vmatprep.mubr.f32.mxu0 0.0
        %547 = vmatmul.mubr.f32.gmra.mrb[0].mxu0 %v438
        %v548 = vpop.f32.mrb[0].mxu0
        %v549 = vadd.f32 0.0, %v548
        %v550 = vpop.f32.mrb[0].mxu0
        %551 = vmatprep.mubr.f32.mxu0 0.0
        %552 = vmatmul.mubr.f32.gmra.mrb[0].mxu0 %v439
        %v553 = vpop.f32.mrb[0].mxu0
        %v554 = vadd.f32 0.0, %v553
        %v555 = vpop.f32.mrb[0].mxu0
        %556 = vmatprep.mubr.f32.mxu0 0.0
        %557 = vmatmul.mubr.f32.gmra.mrb[0].mxu0 %v440
        %v558 = vpop.f32.mrb[0].mxu0
        %v559 = vadd.f32 0.0, %v558
        %v560 = vpop.f32.mrb[0].mxu0
        %561 = vmatprep.mubr.f32.mxu0 0.0
        %562 = vmatmul.mubr.f32.gmra.mrb[0].mxu0 %v441
        %v563 = vpop.f32.mrb[0].mxu0
        %v564 = vadd.f32 0.0, %v563
        %v565 = vpop.f32.mrb[0].mxu0
        %566 = vmatprep.mubr.f32.mxu0 0.0
        %567 = vmatmul.mubr.f32.gmra.mrb[0].mxu0 %v442
        %v568 = vpop.f32.mrb[0].mxu0
        %v569 = vadd.f32 0.0, %v568
        %v570 = vpop.f32.mrb[0].mxu0
        %571 = vmatprep.mubr.f32.mxu0 0.0
        %572 = vmatmul.mubr.f32.gmra.mrb[0].mxu0 %v443
        %v573 = vpop.f32.mrb[0].mxu0
        %v574 = vadd.f32 0.0, %v573
        %v575 = vpop.f32.mrb[0].mxu0
        %576 = vmatprep.mubr.f32.mxu0 0.0
        %577 = vmatmul.mubr.f32.gmra.mrb[0].mxu0 %v444
        %v578 = vpop.f32.mrb[0].mxu0
        %v579 = vadd.f32 0.0, %v578
        %v580 = vpop.f32.mrb[0].mxu0
        %581 = vmatprep.mubr.f32.mxu0 0.0
        %582 = vmatmul.mubr.f32.gmra.mrb[0].mxu0 %v445
        %v583 = vpop.f32.mrb[0].mxu0
        %v584 = vadd.f32 0.0, %v583
        %v585 = vpop.f32.mrb[0].mxu0
        %586 = vmatprep.mubr.f32.mxu0 0.0
        %587 = vmatmul.mubr.f32.gmra.mrb[0].mxu0 %v446
        %v588 = vpop.f32.mrb[0].mxu0
        %v589 = vadd.f32 0.0, %v588
        %v590 = vpop.f32.mrb[0].mxu0
        %591 = vdwg.mxu0
        %v592 = vld [vmem:[%s343] sm:$0xff]
        %v593 = vld [vmem:[%s343 + $0x8] sm:$0xff]
        %v594 = vld [vmem:[%s343 + $0x10] sm:$0xff]
        %v595 = vld [vmem:[%s343 + $0x18] sm:$0xff]
        %v596 = vld [vmem:[%s343 + $0x20] sm:$0xff]
        %v597 = vld [vmem:[%s343 + $0x28] sm:$0xff]
        %v598 = vld [vmem:[%s343 + $0x30] sm:$0xff]
        %v599 = vld [vmem:[%s343 + $0x38] sm:$0xff]
        %v600 = vld [vmem:[%s343 + $0x40] sm:$0xff]
        %v601 = vld [vmem:[%s343 + $0x48] sm:$0xff]
        %v602 = vld [vmem:[%s343 + $0x50] sm:$0xff]
        %v603 = vld [vmem:[%s343 + $0x58] sm:$0xff]
        %v604 = vld [vmem:[%s343 + $0x60] sm:$0xff]
        %v605 = vld [vmem:[%s343 + $0x68] sm:$0xff]
        %v606 = vld [vmem:[%s343 + $0x70] sm:$0xff]
        %v607 = vld [vmem:[%s343 + $0x78] sm:$0xff]
        %608 = vmatprep.subr.mxu0 0.0
        %609 = vmatpush1.msra.mxu0 %v415
        %610 = vmatprep.subr.mxu0 0.0
        %611 = vmatpush1.msra.mxu0 %v416
        %612 = vmatprep.subr.mxu0 0.0
        %613 = vmatpush1.msra.mxu0 %v417
        %614 = vmatprep.subr.mxu0 0.0
        %615 = vmatpush1.msra.mxu0 %v418
        %616 = vmatprep.subr.mxu0 0.0
        %617 = vmatpush1.msra.mxu0 %v419
        %618 = vmatprep.subr.mxu0 0.0
        %619 = vmatpush1.msra.mxu0 %v420
        %620 = vmatprep.subr.mxu0 0.0
        %621 = vmatpush1.msra.mxu0 %v421
        %622 = vmatprep.subr.mxu0 0.0
        %623 = vmatpush1.msra.mxu0 %v422
        %624 = vmatprep.subr.mxu0 0.0
        %625 = vmatpush1.msra.mxu0 %v423
        %626 = vmatprep.subr.mxu0 0.0
        %627 = vmatpush1.msra.mxu0 %v424
        %628 = vmatprep.subr.mxu0 0.0
        %629 = vmatpush1.msra.mxu0 %v425
        %630 = vmatprep.subr.mxu0 0.0
        %631 = vmatpush1.msra.mxu0 %v426
        %632 = vmatprep.subr.mxu0 0.0
        %633 = vmatpush1.msra.mxu0 %v427
        %634 = vmatprep.subr.mxu0 0.0
        %635 = vmatpush1.msra.mxu0 %v428
        %636 = vmatprep.subr.mxu0 0.0
        %637 = vmatpush1.msra.mxu0 %v429
        %638 = vmatprep.subr.mxu0 0.0
        %639 = vmatpush1.msra.mxu0 %v430
        %640 = vmatprep.subr.mxu0 0.0
        %641 = vmatpush1.msra.mxu0 0.0
        %642 = vmatprep.subr.mxu0 0.0
        %643 = vmatpush1.msra.mxu0 0.0
        %644 = vmatprep.subr.mxu0 0.0
        %645 = vmatpush1.msra.mxu0 0.0
        %646 = vmatprep.subr.mxu0 0.0
        %647 = vmatpush1.msra.mxu0 0.0
        %648 = vmatprep.subr.mxu0 0.0
        %649 = vmatpush1.msra.mxu0 0.0
        %650 = vmatprep.subr.mxu0 0.0
        %651 = vmatpush1.msra.mxu0 0.0
        %652 = vmatprep.subr.mxu0 0.0
        %653 = vmatpush1.msra.mxu0 0.0
        %654 = vmatprep.subr.mxu0 0.0
        %655 = vmatpush1.msra.mxu0 0.0
        %656 = vmatprep.subr.mxu0 0.0
        %657 = vmatpush1.msra.mxu0 0.0
        %658 = vmatprep.subr.mxu0 0.0
        %659 = vmatpush1.msra.mxu0 0.0
        %660 = vmatprep.subr.mxu0 0.0
        %661 = vmatpush1.msra.mxu0 0.0
        %662 = vmatprep.subr.mxu0 0.0
        %663 = vmatpush1.msra.mxu0 0.0
        %664 = vmatprep.subr.mxu0 0.0
        %665 = vmatpush1.msra.mxu0 0.0
        %666 = vmatprep.subr.mxu0 0.0
        %667 = vmatpush1.msra.mxu0 0.0
        %668 = vmatprep.subr.mxu0 0.0
        %669 = vmatpush1.msra.mxu0 0.0
        %670 = vmatprep.subr.mxu0 0.0
        %671 = vmatpush1.msra.mxu0 0.0
        %672 = vmatprep.mubr.f32.mxu0 0.0
        %673 = vmatmul.mubr.f32.gmra.mrb[0].mxu0 %v592
        %v674 = vpop.f32.mrb[0].mxu0
        %v675 = vadd.f32 0.0, %v674
        %v676 = vpop.f32.mrb[0].mxu0
        %677 = vmatprep.mubr.f32.mxu0 0.0
        %678 = vmatmul.mubr.f32.gmra.mrb[0].mxu0 %v593
        %v679 = vpop.f32.mrb[0].mxu0
        %v680 = vadd.f32 0.0, %v679
        %v681 = vpop.f32.mrb[0].mxu0
        %682 = vmatprep.mubr.f32.mxu0 0.0
        %683 = vmatmul.mubr.f32.gmra.mrb[0].mxu0 %v594
        %v684 = vpop.f32.mrb[0].mxu0
        %v685 = vadd.f32 0.0, %v684
        %v686 = vpop.f32.mrb[0].mxu0
        %687 = vmatprep.mubr.f32.mxu0 0.0
        %688 = vmatmul.mubr.f32.gmra.mrb[0].mxu0 %v595
        %v689 = vpop.f32.mrb[0].mxu0
        %v690 = vadd.f32 0.0, %v689
        %v691 = vpop.f32.mrb[0].mxu0
        %692 = vmatprep.mubr.f32.mxu0 0.0
        %693 = vmatmul.mubr.f32.gmra.mrb[0].mxu0 %v596
        %v694 = vpop.f32.mrb[0].mxu0
        %v695 = vadd.f32 0.0, %v694
        %v696 = vpop.f32.mrb[0].mxu0
        %697 = vmatprep.mubr.f32.mxu0 0.0
        %698 = vmatmul.mubr.f32.gmra.mrb[0].mxu0 %v597
        %v699 = vpop.f32.mrb[0].mxu0
        %v700 = vadd.f32 0.0, %v699
        %v701 = vpop.f32.mrb[0].mxu0
        %702 = vmatprep.mubr.f32.mxu0 0.0
        %703 = vmatmul.mubr.f32.gmra.mrb[0].mxu0 %v598
        %v704 = vpop.f32.mrb[0].mxu0
        %v705 = vadd.f32 0.0, %v704
        %v706 = vpop.f32.mrb[0].mxu0
        %707 = vmatprep.mubr.f32.mxu0 0.0
        %708 = vmatmul.mubr.f32.gmra.mrb[0].mxu0 %v599
        %v709 = vpop.f32.mrb[0].mxu0
        %v710 = vadd.f32 0.0, %v709
        %v711 = vpop.f32.mrb[0].mxu0
        %712 = vmatprep.mubr.f32.mxu0 0.0
        %713 = vmatmul.mubr.f32.gmra.mrb[0].mxu0 %v600
        %v714 = vpop.f32.mrb[0].mxu0
        %v715 = vadd.f32 0.0, %v714
        %v716 = vpop.f32.mrb[0].mxu0
        %717 = vmatprep.mubr.f32.mxu0 0.0
        %718 = vmatmul.mubr.f32.gmra.mrb[0].mxu0 %v601
        %v719 = vpop.f32.mrb[0].mxu0
        %v720 = vadd.f32 0.0, %v719
        %v721 = vpop.f32.mrb[0].mxu0
        %722 = vmatprep.mubr.f32.mxu0 0.0
        %723 = vmatmul.mubr.f32.gmra.mrb[0].mxu0 %v602
        %v724 = vpop.f32.mrb[0].mxu0
        %v725 = vadd.f32 0.0, %v724
        %v726 = vpop.f32.mrb[0].mxu0
        %727 = vmatprep.mubr.f32.mxu0 0.0
        %728 = vmatmul.mubr.f32.gmra.mrb[0].mxu0 %v603
        %v729 = vpop.f32.mrb[0].mxu0
        %v730 = vadd.f32 0.0, %v729
        %v731 = vpop.f32.mrb[0].mxu0
        %732 = vmatprep.mubr.f32.mxu0 0.0
        %733 = vmatmul.mubr.f32.gmra.mrb[0].mxu0 %v604
        %v734 = vpop.f32.mrb[0].mxu0
        %v735 = vadd.f32 0.0, %v734
        %v736 = vpop.f32.mrb[0].mxu0
        %737 = vmatprep.mubr.f32.mxu0 0.0
        %738 = vmatmul.mubr.f32.gmra.mrb[0].mxu0 %v605
        %v739 = vpop.f32.mrb[0].mxu0
        %v740 = vadd.f32 0.0, %v739
        %v741 = vpop.f32.mrb[0].mxu0
        %742 = vmatprep.mubr.f32.mxu0 0.0
        %743 = vmatmul.mubr.f32.gmra.mrb[0].mxu0 %v606
        %v744 = vpop.f32.mrb[0].mxu0
        %v745 = vadd.f32 0.0, %v744
        %v746 = vpop.f32.mrb[0].mxu0
        %747 = vmatprep.mubr.f32.mxu0 0.0
        %748 = vmatmul.mubr.f32.gmra.mrb[0].mxu0 %v607
        %v749 = vpop.f32.mrb[0].mxu0
        %v750 = vadd.f32 0.0, %v749
        %v751 = vpop.f32.mrb[0].mxu0
        %752 = vdwg.mxu0
        %753 = vmatprep.subr.mxu0 0.0
        %754 = vmatpush1.xpose.msra.mxu0 %v675
        %755 = vmatprep.subr.mxu0 0.0
        %756 = vmatpush1.xpose.msra.mxu0 %v680
        %757 = vmatprep.subr.mxu0 0.0
        %758 = vmatpush1.xpose.msra.mxu0 %v685
        %759 = vmatprep.subr.mxu0 0.0
        %760 = vmatpush1.xpose.msra.mxu0 %v690
        %761 = vmatprep.subr.mxu0 0.0
        %762 = vmatpush1.xpose.msra.mxu0 %v695
        %763 = vmatprep.subr.mxu0 0.0
        %764 = vmatpush1.xpose.msra.mxu0 %v700
        %765 = vmatprep.subr.mxu0 0.0
        %766 = vmatpush1.xpose.msra.mxu0 %v705
        %767 = vmatprep.subr.mxu0 0.0
        %768 = vmatpush1.xpose.msra.mxu0 %v710
        %769 = vmatprep.subr.mxu0 0.0
        %770 = vmatpush1.xpose.msra.mxu0 %v715
        %771 = vmatprep.subr.mxu0 0.0
        %772 = vmatpush1.xpose.msra.mxu0 %v720
        %773 = vmatprep.subr.mxu0 0.0
        %774 = vmatpush1.xpose.msra.mxu0 %v725
        %775 = vmatprep.subr.mxu0 0.0
        %776 = vmatpush1.xpose.msra.mxu0 %v730
        %777 = vmatprep.subr.mxu0 0.0
        %778 = vmatpush1.xpose.msra.mxu0 %v735
        %779 = vmatprep.subr.mxu0 0.0
        %780 = vmatpush1.xpose.msra.mxu0 %v740
        %781 = vmatprep.subr.mxu0 0.0
        %782 = vmatpush1.xpose.msra.mxu0 %v745
        %783 = vmatprep.subr.mxu0 0.0
        %784 = vmatpush1.xpose.msra.mxu0 %v750
        %785 = vmatprep.subr.mxu0 0.0
        %786 = vmatpush1.xpose.msra.mxu0 0.0
        %787 = vmatprep.subr.mxu0 0.0
        %788 = vmatpush1.xpose.msra.mxu0 0.0
        %789 = vmatprep.subr.mxu0 0.0
        %790 = vmatpush1.xpose.msra.mxu0 0.0
        %791 = vmatprep.subr.mxu0 0.0
        %792 = vmatpush1.xpose.msra.mxu0 0.0
        %793 = vmatprep.subr.mxu0 0.0
        %794 = vmatpush1.xpose.msra.mxu0 0.0
        %795 = vmatprep.subr.mxu0 0.0
        %796 = vmatpush1.xpose.msra.mxu0 0.0
        %797 = vmatprep.subr.mxu0 0.0
        %798 = vmatpush1.xpose.msra.mxu0 0.0
        %799 = vmatprep.subr.mxu0 0.0
        %800 = vmatpush1.xpose.msra.mxu0 0.0
        %801 = vmatprep.subr.mxu0 0.0
        %802 = vmatpush1.xpose.msra.mxu0 0.0
        %803 = vmatprep.subr.mxu0 0.0
        %804 = vmatpush1.xpose.msra.mxu0 0.0
        %805 = vmatprep.subr.mxu0 0.0
        %806 = vmatpush1.xpose.msra.mxu0 0.0
        %807 = vmatprep.subr.mxu0 0.0
        %808 = vmatpush1.xpose.msra.mxu0 0.0
        %809 = vmatprep.subr.mxu0 0.0
        %810 = vmatpush1.xpose.msra.mxu0 0.0
        %811 = vmatprep.subr.mxu0 0.0
        %812 = vmatpush1.xpose.msra.mxu0 0.0
        %813 = vmatprep.subr.mxu0 0.0
        %814 = vmatpush1.xpose.msra.mxu0 0.0
        %815 = vmatprep.subr.mxu0 0.0
        %816 = vmatpush1.xpose.msra.mxu0 0.0
        %817 = vmatprep.mubr.f32.mxu0 0.0
        %818 = vmatmul.mubr.f32.gmra.mrb[0].mxu0 %v514
        %v819 = vpop.f32.mrb[0].mxu0
        %v820 = vadd.f32 0.0, %v819
        %v821 = vpop.f32.mrb[0].mxu0
        %822 = vmatprep.mubr.f32.mxu0 0.0
        %823 = vmatmul.mubr.f32.gmra.mrb[0].mxu0 %v519
        %v824 = vpop.f32.mrb[0].mxu0
        %v825 = vadd.f32 0.0, %v824
        %v826 = vpop.f32.mrb[0].mxu0
        %827 = vmatprep.mubr.f32.mxu0 0.0
        %828 = vmatmul.mubr.f32.gmra.mrb[0].mxu0 %v524
        %v829 = vpop.f32.mrb[0].mxu0
        %v830 = vadd.f32 0.0, %v829
        %v831 = vpop.f32.mrb[0].mxu0
        %832 = vmatprep.mubr.f32.mxu0 0.0
        %833 = vmatmul.mubr.f32.gmra.mrb[0].mxu0 %v529
        %v834 = vpop.f32.mrb[0].mxu0
        %v835 = vadd.f32 0.0, %v834
        %v836 = vpop.f32.mrb[0].mxu0
        %837 = vmatprep.mubr.f32.mxu0 0.0
        %838 = vmatmul.mubr.f32.gmra.mrb[0].mxu0 %v534
        %v839 = vpop.f32.mrb[0].mxu0
        %v840 = vadd.f32 0.0, %v839
        %v841 = vpop.f32.mrb[0].mxu0
        %842 = vmatprep.mubr.f32.mxu0 0.0
        %843 = vmatmul.mubr.f32.gmra.mrb[0].mxu0 %v539
        %v844 = vpop.f32.mrb[0].mxu0
        %v845 = vadd.f32 0.0, %v844
        %v846 = vpop.f32.mrb[0].mxu0
        %847 = vmatprep.mubr.f32.mxu0 0.0
        %848 = vmatmul.mubr.f32.gmra.mrb[0].mxu0 %v544
        %v849 = vpop.f32.mrb[0].mxu0
        %v850 = vadd.f32 0.0, %v849
        %v851 = vpop.f32.mrb[0].mxu0
        %852 = vmatprep.mubr.f32.mxu0 0.0
        %853 = vmatmul.mubr.f32.gmra.mrb[0].mxu0 %v549
        %v854 = vpop.f32.mrb[0].mxu0
        %v855 = vadd.f32 0.0, %v854
        %v856 = vpop.f32.mrb[0].mxu0
        %857 = vmatprep.mubr.f32.mxu0 0.0
        %858 = vmatmul.mubr.f32.gmra.mrb[0].mxu0 %v554
        %v859 = vpop.f32.mrb[0].mxu0
        %v860 = vadd.f32 0.0, %v859
        %v861 = vpop.f32.mrb[0].mxu0
        %862 = vmatprep.mubr.f32.mxu0 0.0
        %863 = vmatmul.mubr.f32.gmra.mrb[0].mxu0 %v559
        %v864 = vpop.f32.mrb[0].mxu0
        %v865 = vadd.f32 0.0, %v864
        %v866 = vpop.f32.mrb[0].mxu0
        %867 = vmatprep.mubr.f32.mxu0 0.0
        %868 = vmatmul.mubr.f32.gmra.mrb[0].mxu0 %v564
        %v869 = vpop.f32.mrb[0].mxu0
        %v870 = vadd.f32 0.0, %v869
        %v871 = vpop.f32.mrb[0].mxu0
        %872 = vmatprep.mubr.f32.mxu0 0.0
        %873 = vmatmul.mubr.f32.gmra.mrb[0].mxu0 %v569
        %v874 = vpop.f32.mrb[0].mxu0
        %v875 = vadd.f32 0.0, %v874
        %v876 = vpop.f32.mrb[0].mxu0
        %877 = vmatprep.mubr.f32.mxu0 0.0
        %878 = vmatmul.mubr.f32.gmra.mrb[0].mxu0 %v574
        %v879 = vpop.f32.mrb[0].mxu0
        %v880 = vadd.f32 0.0, %v879
        %v881 = vpop.f32.mrb[0].mxu0
        %882 = vmatprep.mubr.f32.mxu0 0.0
        %883 = vmatmul.mubr.f32.gmra.mrb[0].mxu0 %v579
        %v884 = vpop.f32.mrb[0].mxu0
        %v885 = vadd.f32 0.0, %v884
        %v886 = vpop.f32.mrb[0].mxu0
        %887 = vmatprep.mubr.f32.mxu0 0.0
        %888 = vmatmul.mubr.f32.gmra.mrb[0].mxu0 %v584
        %v889 = vpop.f32.mrb[0].mxu0
        %v890 = vadd.f32 0.0, %v889
        %v891 = vpop.f32.mrb[0].mxu0
        %892 = vmatprep.mubr.f32.mxu0 0.0
        %893 = vmatmul.mubr.f32.gmra.mrb[0].mxu0 %v589
        %v894 = vpop.f32.mrb[0].mxu0
        %v895 = vadd.f32 0.0, %v894
        %v896 = vpop.f32.mrb[0].mxu0
        %897 = vdwg.mxu0
        %s898 = smul.u32 %s35, 2
        %s899 = sld [smem:[#allocation3 + %s898]]
        %s900 = sadd.s32 %s898, 1
        %s901 = sld [smem:[#allocation3 + %s900]]
        %v902 = vlaneseq
        %v903 = vshrl.u32 %v902, 7
        %v904 = vadd.s32 %v903, 8
        %v905 = vadd.s32 %v903, 16
        %v906 = vadd.s32 %v903, 24
        %v907 = vadd.s32 %v903, 32
        %v908 = vadd.s32 %v903, 40
        %v909 = vadd.s32 %v903, 48
        %v910 = vadd.s32 %v903, 56
        %v911 = vadd.s32 %v903, 64
        %v912 = vadd.s32 %v903, 72
        %v913 = vadd.s32 %v903, 80
        %v914 = vadd.s32 %v903, 88
        %v915 = vadd.s32 %v903, 96
        %v916 = vadd.s32 %v903, 104
        %v917 = vadd.s32 %v903, 112
        %v918 = vadd.s32 %v903, 120
        %v919 = vlaneseq
        %v920 = vand.u32 %v919, 127
        %v921 = vstv %s899
        %vm922 = vcmp.lt.s32.totalorder %v903, %v921
        %vm923 = vcmp.lt.s32.totalorder %v904, %v921
        %vm924 = vcmp.lt.s32.totalorder %v905, %v921
        %vm925 = vcmp.lt.s32.totalorder %v906, %v921
        %vm926 = vcmp.lt.s32.totalorder %v907, %v921
        %vm927 = vcmp.lt.s32.totalorder %v908, %v921
        %vm928 = vcmp.lt.s32.totalorder %v909, %v921
        %vm929 = vcmp.lt.s32.totalorder %v910, %v921
        %vm930 = vcmp.lt.s32.totalorder %v911, %v921
        %vm931 = vcmp.lt.s32.totalorder %v912, %v921
        %vm932 = vcmp.lt.s32.totalorder %v913, %v921
        %vm933 = vcmp.lt.s32.totalorder %v914, %v921
        %vm934 = vcmp.lt.s32.totalorder %v915, %v921
        %vm935 = vcmp.lt.s32.totalorder %v916, %v921
        %vm936 = vcmp.lt.s32.totalorder %v917, %v921
        %vm937 = vcmp.lt.s32.totalorder %v918, %v921
        %v938 = vstv %s901
        %vm939 = vcmp.lt.s32.totalorder %v920, %v938
        %v940 = vsel %vm939, 1, 0
        %vm941 = vcmp.eq.s32.totalorder %v940, 1
        %v942 = vsel %vm941, %v820, -1e+30
        %v943 = vsel %vm941, %v825, -1e+30
        %v944 = vsel %vm941, %v830, -1e+30
        %v945 = vsel %vm941, %v835, -1e+30
        %v946 = vsel %vm941, %v840, -1e+30
        %v947 = vsel %vm941, %v845, -1e+30
        %v948 = vsel %vm941, %v850, -1e+30
        %v949 = vsel %vm941, %v855, -1e+30
        %v950 = vsel %vm941, %v860, -1e+30
        %v951 = vsel %vm941, %v865, -1e+30
        %v952 = vsel %vm941, %v870, -1e+30
        %v953 = vsel %vm941, %v875, -1e+30
        %v954 = vsel %vm941, %v880, -1e+30
        %v955 = vsel %vm941, %v885, -1e+30
        %v956 = vsel %vm941, %v890, -1e+30
        %v957 = vsel %vm941, %v895, -1e+30
        %958 = vmax.xlane.f32.xlu0 %v942
        %v959 = vpop.xlane.xlu0 %958
        %960 = vmax.xlane.f32.xlu0 %v943
        %v961 = vpop.xlane.xlu0 %960
        %962 = vmax.xlane.f32.xlu0 %v944
        %v963 = vpop.xlane.xlu0 %962
        %964 = vmax.xlane.f32.xlu0 %v945
        %v965 = vpop.xlane.xlu0 %964
        %966 = vmax.xlane.f32.xlu0 %v946
        %v967 = vpop.xlane.xlu0 %966
        %968 = vmax.xlane.f32.xlu0 %v947
        %v969 = vpop.xlane.xlu0 %968
        %970 = vmax.xlane.f32.xlu0 %v948
        %v971 = vpop.xlane.xlu0 %970
        %972 = vmax.xlane.f32.xlu0 %v949
        %v973 = vpop.xlane.xlu0 %972
        %974 = vmax.xlane.f32.xlu0 %v950
        %v975 = vpop.xlane.xlu0 %974
        %976 = vmax.xlane.f32.xlu0 %v951
        %v977 = vpop.xlane.xlu0 %976
        %978 = vmax.xlane.f32.xlu0 %v952
        %v979 = vpop.xlane.xlu0 %978
        %980 = vmax.xlane.f32.xlu0 %v953
        %v981 = vpop.xlane.xlu0 %980
        %982 = vmax.xlane.f32.xlu0 %v954
        %v983 = vpop.xlane.xlu0 %982
        %984 = vmax.xlane.f32.xlu0 %v955
        %v985 = vpop.xlane.xlu0 %984
        %986 = vmax.xlane.f32.xlu0 %v956
        %v987 = vpop.xlane.xlu0 %986
        %988 = vmax.xlane.f32.xlu0 %v957
        %v989 = vpop.xlane.xlu0 %988
        %v990 = vsub.f32 %v942, %v959
        %v991 = vsub.f32 %v943, %v961
        %v992 = vsub.f32 %v944, %v963
        %v993 = vsub.f32 %v945, %v965
        %v994 = vsub.f32 %v946, %v967
        %v995 = vsub.f32 %v947, %v969
        %v996 = vsub.f32 %v948, %v971
        %v997 = vsub.f32 %v949, %v973
        %v998 = vsub.f32 %v950, %v975
        %v999 = vsub.f32 %v951, %v977
        %v1000 = vsub.f32 %v952, %v979
        %v1001 = vsub.f32 %v953, %v981
        %v1002 = vsub.f32 %v954, %v983
        %v1003 = vsub.f32 %v955, %v985
        %v1004 = vsub.f32 %v956, %v987
        %v1005 = vsub.f32 %v957, %v989
        %v1006 = vmul.f32 %v990, 1.442695
        %v1007 = vpow.pop %v1006
        %v1008 = vmul.f32 %v991, 1.442695
        %v1009 = vpow.pop %v1008
        %v1010 = vmul.f32 %v992, 1.442695
        %v1011 = vpow.pop %v1010
        %v1012 = vmul.f32 %v993, 1.442695
        %v1013 = vpow.pop %v1012
        %v1014 = vmul.f32 %v994, 1.442695
        %v1015 = vpow.pop %v1014
        %v1016 = vmul.f32 %v995, 1.442695
        %v1017 = vpow.pop %v1016
        %v1018 = vmul.f32 %v996, 1.442695
        %v1019 = vpow.pop %v1018
        %v1020 = vmul.f32 %v997, 1.442695
        %v1021 = vpow.pop %v1020
        %v1022 = vmul.f32 %v998, 1.442695
        %v1023 = vpow.pop %v1022
        %v1024 = vmul.f32 %v999, 1.442695
        %v1025 = vpow.pop %v1024
        %v1026 = vmul.f32 %v1000, 1.442695
        %v1027 = vpow.pop %v1026
        %v1028 = vmul.f32 %v1001, 1.442695
        %v1029 = vpow.pop %v1028
        %v1030 = vmul.f32 %v1002, 1.442695
        %v1031 = vpow.pop %v1030
        %v1032 = vmul.f32 %v1003, 1.442695
        %v1033 = vpow.pop %v1032
        %v1034 = vmul.f32 %v1004, 1.442695
        %v1035 = vpow.pop %v1034
        %v1036 = vmul.f32 %v1005, 1.442695
        %v1037 = vpow.pop %v1036
        %1038 = vadd.xlane.f32.xlu0 %v1007
        %v1039 = vpop.xlane.xlu0 %1038
        %1040 = vadd.xlane.f32.xlu0 %v1009
        %v1041 = vpop.xlane.xlu0 %1040
        %1042 = vadd.xlane.f32.xlu0 %v1011
        %v1043 = vpop.xlane.xlu0 %1042
        %1044 = vadd.xlane.f32.xlu0 %v1013
        %v1045 = vpop.xlane.xlu0 %1044
        %1046 = vadd.xlane.f32.xlu0 %v1015
        %v1047 = vpop.xlane.xlu0 %1046
        %1048 = vadd.xlane.f32.xlu0 %v1017
        %v1049 = vpop.xlane.xlu0 %1048
        %1050 = vadd.xlane.f32.xlu0 %v1019
        %v1051 = vpop.xlane.xlu0 %1050
        %1052 = vadd.xlane.f32.xlu0 %v1021
        %v1053 = vpop.xlane.xlu0 %1052
        %1054 = vadd.xlane.f32.xlu0 %v1023
        %v1055 = vpop.xlane.xlu0 %1054
        %1056 = vadd.xlane.f32.xlu0 %v1025
        %v1057 = vpop.xlane.xlu0 %1056
        %1058 = vadd.xlane.f32.xlu0 %v1027
        %v1059 = vpop.xlane.xlu0 %1058
        %1060 = vadd.xlane.f32.xlu0 %v1029
        %v1061 = vpop.xlane.xlu0 %1060
        %1062 = vadd.xlane.f32.xlu0 %v1031
        %v1063 = vpop.xlane.xlu0 %1062
        %1064 = vadd.xlane.f32.xlu0 %v1033
        %v1065 = vpop.xlane.xlu0 %1064
        %1066 = vadd.xlane.f32.xlu0 %v1035
        %v1067 = vpop.xlane.xlu0 %1066
        %1068 = vadd.xlane.f32.xlu0 %v1037
        %v1069 = vpop.xlane.xlu0 %1068
        %v1070 = vrcp.pop %v1039
        %v1071 = vrcp.pop %v1041
        %v1072 = vrcp.pop %v1043
        %v1073 = vrcp.pop %v1045
        %v1074 = vrcp.pop %v1047
        %v1075 = vrcp.pop %v1049
        %v1076 = vrcp.pop %v1051
        %v1077 = vrcp.pop %v1053
        %v1078 = vrcp.pop %v1055
        %v1079 = vrcp.pop %v1057
        %v1080 = vrcp.pop %v1059
        %v1081 = vrcp.pop %v1061
        %v1082 = vrcp.pop %v1063
        %v1083 = vrcp.pop %v1065
        %v1084 = vrcp.pop %v1067
        %v1085 = vrcp.pop %v1069
        %v1086 = vmul.f32 %v1007, %v1070
        %v1087 = vmul.f32 %v1009, %v1071
        %v1088 = vmul.f32 %v1011, %v1072
        %v1089 = vmul.f32 %v1013, %v1073
        %v1090 = vmul.f32 %v1015, %v1074
        %v1091 = vmul.f32 %v1017, %v1075
        %v1092 = vmul.f32 %v1019, %v1076
        %v1093 = vmul.f32 %v1021, %v1077
        %v1094 = vmul.f32 %v1023, %v1078
        %v1095 = vmul.f32 %v1025, %v1079
        %v1096 = vmul.f32 %v1027, %v1080
        %v1097 = vmul.f32 %v1029, %v1081
        %v1098 = vmul.f32 %v1031, %v1082
        %v1099 = vmul.f32 %v1033, %v1083
        %v1100 = vmul.f32 %v1035, %v1084
        %v1101 = vmul.f32 %v1037, %v1085
        %v1102 = vsel %vm941, %v1086, 0.0
        %v1103 = vsel %vm941, %v1087, 0.0
        %v1104 = vsel %vm941, %v1088, 0.0
        %v1105 = vsel %vm941, %v1089, 0.0
        %v1106 = vsel %vm941, %v1090, 0.0
        %v1107 = vsel %vm941, %v1091, 0.0
        %v1108 = vsel %vm941, %v1092, 0.0
        %v1109 = vsel %vm941, %v1093, 0.0
        %v1110 = vsel %vm941, %v1094, 0.0
        %v1111 = vsel %vm941, %v1095, 0.0
        %v1112 = vsel %vm941, %v1096, 0.0
        %v1113 = vsel %vm941, %v1097, 0.0
        %v1114 = vsel %vm941, %v1098, 0.0
        %v1115 = vsel %vm941, %v1099, 0.0
        %v1116 = vsel %vm941, %v1100, 0.0
        %v1117 = vsel %vm941, %v1101, 0.0
        %v1118 = vsel %vm922, 1, 0
        %v1119 = vsel %vm923, 1, 0
        %v1120 = vsel %vm924, 1, 0
        %v1121 = vsel %vm925, 1, 0
        %v1122 = vsel %vm926, 1, 0
        %v1123 = vsel %vm927, 1, 0
        %v1124 = vsel %vm928, 1, 0
        %v1125 = vsel %vm929, 1, 0
        %v1126 = vsel %vm930, 1, 0
        %v1127 = vsel %vm931, 1, 0
        %v1128 = vsel %vm932, 1, 0
        %v1129 = vsel %vm933, 1, 0
        %v1130 = vsel %vm934, 1, 0
        %v1131 = vsel %vm935, 1, 0
        %v1132 = vsel %vm936, 1, 0
        %v1133 = vsel %vm937, 1, 0
        %vm1134 = vcmp.eq.s32.totalorder %v1118, 1
        %vm1135 = vcmp.eq.s32.totalorder %v1119, 1
        %vm1136 = vcmp.eq.s32.totalorder %v1120, 1
        %vm1137 = vcmp.eq.s32.totalorder %v1121, 1
        %vm1138 = vcmp.eq.s32.totalorder %v1122, 1
        %vm1139 = vcmp.eq.s32.totalorder %v1123, 1
        %vm1140 = vcmp.eq.s32.totalorder %v1124, 1
        %vm1141 = vcmp.eq.s32.totalorder %v1125, 1
        %vm1142 = vcmp.eq.s32.totalorder %v1126, 1
        %vm1143 = vcmp.eq.s32.totalorder %v1127, 1
        %vm1144 = vcmp.eq.s32.totalorder %v1128, 1
        %vm1145 = vcmp.eq.s32.totalorder %v1129, 1
        %vm1146 = vcmp.eq.s32.totalorder %v1130, 1
        %vm1147 = vcmp.eq.s32.totalorder %v1131, 1
        %vm1148 = vcmp.eq.s32.totalorder %v1132, 1
        %vm1149 = vcmp.eq.s32.totalorder %v1133, 1
        %v1150 = vsel %vm1134, %v1102, 0.0
        %v1151 = vsel %vm1135, %v1103, 0.0
        %v1152 = vsel %vm1136, %v1104, 0.0
        %v1153 = vsel %vm1137, %v1105, 0.0
        %v1154 = vsel %vm1138, %v1106, 0.0
        %v1155 = vsel %vm1139, %v1107, 0.0
        %v1156 = vsel %vm1140, %v1108, 0.0
        %v1157 = vsel %vm1141, %v1109, 0.0
        %v1158 = vsel %vm1142, %v1110, 0.0
        %v1159 = vsel %vm1143, %v1111, 0.0
        %v1160 = vsel %vm1144, %v1112, 0.0
        %v1161 = vsel %vm1145, %v1113, 0.0
        %v1162 = vsel %vm1146, %v1114, 0.0
        %v1163 = vsel %vm1147, %v1115, 0.0
        %v1164 = vsel %vm1148, %v1116, 0.0
        %v1165 = vsel %vm1149, %v1117, 0.0
        %v1166 = vmul.f32 %v820, %v1150
        %v1167 = vmul.f32 %v825, %v1151
        %v1168 = vmul.f32 %v830, %v1152
        %v1169 = vmul.f32 %v835, %v1153
        %v1170 = vmul.f32 %v840, %v1154
        %v1171 = vmul.f32 %v845, %v1155
        %v1172 = vmul.f32 %v850, %v1156
        %v1173 = vmul.f32 %v855, %v1157
        %v1174 = vmul.f32 %v860, %v1158
        %v1175 = vmul.f32 %v865, %v1159
        %v1176 = vmul.f32 %v870, %v1160
        %v1177 = vmul.f32 %v875, %v1161
        %v1178 = vmul.f32 %v880, %v1162
        %v1179 = vmul.f32 %v885, %v1163
        %v1180 = vmul.f32 %v890, %v1164
        %v1181 = vmul.f32 %v895, %v1165
        %1182 = vadd.xlane.f32.xlu0 %v1166
        %v1183 = vpop.xlane.xlu0 %1182
        %1184 = vadd.xlane.f32.xlu0 %v1167
        %v1185 = vpop.xlane.xlu0 %1184
        %1186 = vadd.xlane.f32.xlu0 %v1168
        %v1187 = vpop.xlane.xlu0 %1186
        %1188 = vadd.xlane.f32.xlu0 %v1169
        %v1189 = vpop.xlane.xlu0 %1188
        %1190 = vadd.xlane.f32.xlu0 %v1170
        %v1191 = vpop.xlane.xlu0 %1190
        %1192 = vadd.xlane.f32.xlu0 %v1171
        %v1193 = vpop.xlane.xlu0 %1192
        %1194 = vadd.xlane.f32.xlu0 %v1172
        %v1195 = vpop.xlane.xlu0 %1194
        %1196 = vadd.xlane.f32.xlu0 %v1173
        %v1197 = vpop.xlane.xlu0 %1196
        %1198 = vadd.xlane.f32.xlu0 %v1174
        %v1199 = vpop.xlane.xlu0 %1198
        %1200 = vadd.xlane.f32.xlu0 %v1175
        %v1201 = vpop.xlane.xlu0 %1200
        %1202 = vadd.xlane.f32.xlu0 %v1176
        %v1203 = vpop.xlane.xlu0 %1202
        %1204 = vadd.xlane.f32.xlu0 %v1177
        %v1205 = vpop.xlane.xlu0 %1204
        %1206 = vadd.xlane.f32.xlu0 %v1178
        %v1207 = vpop.xlane.xlu0 %1206
        %1208 = vadd.xlane.f32.xlu0 %v1179
        %v1209 = vpop.xlane.xlu0 %1208
        %1210 = vadd.xlane.f32.xlu0 %v1180
        %v1211 = vpop.xlane.xlu0 %1210
        %1212 = vadd.xlane.f32.xlu0 %v1181
        %v1213 = vpop.xlane.xlu0 %1212
        %v1214 = vadd.f32 %v1183, %v1185
        %v1215 = vadd.f32 %v1214, %v1187
        %v1216 = vadd.f32 %v1215, %v1189
        %v1217 = vadd.f32 %v1216, %v1191
        %v1218 = vadd.f32 %v1217, %v1193
        %v1219 = vadd.f32 %v1218, %v1195
        %v1220 = vadd.f32 %v1219, %v1197
        %v1221 = vadd.f32 %v1220, %v1199
        %v1222 = vadd.f32 %v1221, %v1201
        %v1223 = vadd.f32 %v1222, %v1203
        %v1224 = vadd.f32 %v1223, %v1205
        %v1225 = vadd.f32 %v1224, %v1207
        %v1226 = vadd.f32 %v1225, %v1209
        %v1227 = vadd.f32 %v1226, %v1211
        %v1228 = vadd.f32 %v1227, %v1213
        %v1229 = vrot.slane %v1228, 4
        %v1230 = vadd.f32 %v1228, %v1229
        %v1231 = vrot.slane %v1230, 2
        %v1232 = vadd.f32 %v1230, %v1231
        %v1233 = vrot.slane %v1232, 1
        %v1234 = vadd.f32 %v1232, %v1233
        %v1235 = vld [vmem:[%s352] sm:$0xf]
        %v1236 = vld [vmem:[%s352 + $0x4] sm:$0xf]
        %v1237 = vld [vmem:[%s352 + $0x8] sm:$0xf]
        %v1238 = vld [vmem:[%s352 + $0xc] sm:$0xf]
        %v1239 = vld [vmem:[%s352 + $0x10] sm:$0xf]
        %v1240 = vld [vmem:[%s352 + $0x14] sm:$0xf]
        %v1241 = vld [vmem:[%s352 + $0x18] sm:$0xf]
        %v1242 = vld [vmem:[%s352 + $0x1c] sm:$0xf]
        %v1243 = vld [vmem:[%s352 + $0x20] sm:$0xf]
        %v1244 = vld [vmem:[%s352 + $0x24] sm:$0xf]
        %v1245 = vld [vmem:[%s352 + $0x28] sm:$0xf]
        %v1246 = vld [vmem:[%s352 + $0x2c] sm:$0xf]
        %v1247 = vld [vmem:[%s352 + $0x30] sm:$0xf]
        %v1248 = vld [vmem:[%s352 + $0x34] sm:$0xf]
        %v1249 = vld [vmem:[%s352 + $0x38] sm:$0xf]
        %v1250 = vld [vmem:[%s352 + $0x3c] sm:$0xf]
        %v1251 = vunpack.c.l.bf16 %v1235
        %v1252 = vunpack.c.l.bf16 %v1236
        %v1253 = vunpack.c.l.bf16 %v1237
        %v1254 = vunpack.c.l.bf16 %v1238
        %v1255 = vunpack.c.l.bf16 %v1239
        %v1256 = vunpack.c.l.bf16 %v1240
        %v1257 = vunpack.c.l.bf16 %v1241
        %v1258 = vunpack.c.l.bf16 %v1242
        %v1259 = vunpack.c.l.bf16 %v1243
        %v1260 = vunpack.c.l.bf16 %v1244
        %v1261 = vunpack.c.l.bf16 %v1245
        %v1262 = vunpack.c.l.bf16 %v1246
        %v1263 = vunpack.c.l.bf16 %v1247
        %v1264 = vunpack.c.l.bf16 %v1248
        %v1265 = vunpack.c.l.bf16 %v1249
        %v1266 = vunpack.c.l.bf16 %v1250
        %1267 = vmatprep.subr.mxu0 0.0
        %1268 = vmatpush1.msra.mxu0 %v1150
        %1269 = vmatprep.subr.mxu0 0.0
        %1270 = vmatpush1.msra.mxu0 %v1151
        %1271 = vmatprep.subr.mxu0 0.0
        %1272 = vmatpush1.msra.mxu0 %v1152
        %1273 = vmatprep.subr.mxu0 0.0
        %1274 = vmatpush1.msra.mxu0 %v1153
        %1275 = vmatprep.subr.mxu0 0.0
        %1276 = vmatpush1.msra.mxu0 %v1154
        %1277 = vmatprep.subr.mxu0 0.0
        %1278 = vmatpush1.msra.mxu0 %v1155
        %1279 = vmatprep.subr.mxu0 0.0
        %1280 = vmatpush1.msra.mxu0 %v1156
        %1281 = vmatprep.subr.mxu0 0.0
        %1282 = vmatpush1.msra.mxu0 %v1157
        %1283 = vmatprep.subr.mxu0 0.0
        %1284 = vmatpush1.msra.mxu0 %v1158
        %1285 = vmatprep.subr.mxu0 0.0
        %1286 = vmatpush1.msra.mxu0 %v1159
        %1287 = vmatprep.subr.mxu0 0.0
        %1288 = vmatpush1.msra.mxu0 %v1160
        %1289 = vmatprep.subr.mxu0 0.0
        %1290 = vmatpush1.msra.mxu0 %v1161
        %1291 = vmatprep.subr.mxu0 0.0
        %1292 = vmatpush1.msra.mxu0 %v1162
        %1293 = vmatprep.subr.mxu0 0.0
        %1294 = vmatpush1.msra.mxu0 %v1163
        %1295 = vmatprep.subr.mxu0 0.0
        %1296 = vmatpush1.msra.mxu0 %v1164
        %1297 = vmatprep.subr.mxu0 0.0
        %1298 = vmatpush1.msra.mxu0 %v1165
        %1299 = vmatprep.subr.mxu0 0.0
        %1300 = vmatpush1.msra.mxu0 0.0
        %1301 = vmatprep.subr.mxu0 0.0
        %1302 = vmatpush1.msra.mxu0 0.0
        %1303 = vmatprep.subr.mxu0 0.0
        %1304 = vmatpush1.msra.mxu0 0.0
        %1305 = vmatprep.subr.mxu0 0.0
        %1306 = vmatpush1.msra.mxu0 0.0
        %1307 = vmatprep.subr.mxu0 0.0
        %1308 = vmatpush1.msra.mxu0 0.0
        %1309 = vmatprep.subr.mxu0 0.0
        %1310 = vmatpush1.msra.mxu0 0.0
        %1311 = vmatprep.subr.mxu0 0.0
        %1312 = vmatpush1.msra.mxu0 0.0
        %1313 = vmatprep.subr.mxu0 0.0
        %1314 = vmatpush1.msra.mxu0 0.0
        %1315 = vmatprep.subr.mxu0 0.0
        %1316 = vmatpush1.msra.mxu0 0.0
        %1317 = vmatprep.subr.mxu0 0.0
        %1318 = vmatpush1.msra.mxu0 0.0
        %1319 = vmatprep.subr.mxu0 0.0
        %1320 = vmatpush1.msra.mxu0 0.0
        %1321 = vmatprep.subr.mxu0 0.0
        %1322 = vmatpush1.msra.mxu0 0.0
        %1323 = vmatprep.subr.mxu0 0.0
        %1324 = vmatpush1.msra.mxu0 0.0
        %1325 = vmatprep.subr.mxu0 0.0
        %1326 = vmatpush1.msra.mxu0 0.0
        %1327 = vmatprep.subr.mxu0 0.0
        %1328 = vmatpush1.msra.mxu0 0.0
        %1329 = vmatprep.subr.mxu0 0.0
        %1330 = vmatpush1.msra.mxu0 0.0
        %1331 = vmatprep.mubr.f32.mxu0 0.0
        %1332 = vmatmul.mubr.f32.gmra.mrb[0].mxu0 %v1251
        %v1333 = vpop.f32.mrb[0].mxu0
        %v1334 = vadd.f32 0.0, %v1333
        %v1335 = vpop.f32.mrb[0].mxu0
        %1336 = vmatprep.mubr.f32.mxu0 0.0
        %1337 = vmatmul.mubr.f32.gmra.mrb[0].mxu0 %v1252
        %v1338 = vpop.f32.mrb[0].mxu0
        %v1339 = vadd.f32 0.0, %v1338
        %v1340 = vpop.f32.mrb[0].mxu0
        %1341 = vmatprep.mubr.f32.mxu0 0.0
        %1342 = vmatmul.mubr.f32.gmra.mrb[0].mxu0 %v1253
        %v1343 = vpop.f32.mrb[0].mxu0
        %v1344 = vadd.f32 0.0, %v1343
        %v1345 = vpop.f32.mrb[0].mxu0
        %1346 = vmatprep.mubr.f32.mxu0 0.0
        %1347 = vmatmul.mubr.f32.gmra.mrb[0].mxu0 %v1254
        %v1348 = vpop.f32.mrb[0].mxu0
        %v1349 = vadd.f32 0.0, %v1348
        %v1350 = vpop.f32.mrb[0].mxu0
        %1351 = vmatprep.mubr.f32.mxu0 0.0
        %1352 = vmatmul.mubr.f32.gmra.mrb[0].mxu0 %v1255
        %v1353 = vpop.f32.mrb[0].mxu0
        %v1354 = vadd.f32 0.0, %v1353
        %v1355 = vpop.f32.mrb[0].mxu0
        %1356 = vmatprep.mubr.f32.mxu0 0.0
        %1357 = vmatmul.mubr.f32.gmra.mrb[0].mxu0 %v1256
        %v1358 = vpop.f32.mrb[0].mxu0
        %v1359 = vadd.f32 0.0, %v1358
        %v1360 = vpop.f32.mrb[0].mxu0
        %1361 = vmatprep.mubr.f32.mxu0 0.0
        %1362 = vmatmul.mubr.f32.gmra.mrb[0].mxu0 %v1257
        %v1363 = vpop.f32.mrb[0].mxu0
        %v1364 = vadd.f32 0.0, %v1363
        %v1365 = vpop.f32.mrb[0].mxu0
        %1366 = vmatprep.mubr.f32.mxu0 0.0
        %1367 = vmatmul.mubr.f32.gmra.mrb[0].mxu0 %v1258
        %v1368 = vpop.f32.mrb[0].mxu0
        %v1369 = vadd.f32 0.0, %v1368
        %v1370 = vpop.f32.mrb[0].mxu0
        %1371 = vmatprep.mubr.f32.mxu0 0.0
        %1372 = vmatmul.mubr.f32.gmra.mrb[0].mxu0 %v1259
        %v1373 = vpop.f32.mrb[0].mxu0
        %v1374 = vadd.f32 0.0, %v1373
        %v1375 = vpop.f32.mrb[0].mxu0
        %1376 = vmatprep.mubr.f32.mxu0 0.0
        %1377 = vmatmul.mubr.f32.gmra.mrb[0].mxu0 %v1260
        %v1378 = vpop.f32.mrb[0].mxu0
        %v1379 = vadd.f32 0.0, %v1378
        %v1380 = vpop.f32.mrb[0].mxu0
        %1381 = vmatprep.mubr.f32.mxu0 0.0
        %1382 = vmatmul.mubr.f32.gmra.mrb[0].mxu0 %v1261
        %v1383 = vpop.f32.mrb[0].mxu0
        %v1384 = vadd.f32 0.0, %v1383
        %v1385 = vpop.f32.mrb[0].mxu0
        %1386 = vmatprep.mubr.f32.mxu0 0.0
        %1387 = vmatmul.mubr.f32.gmra.mrb[0].mxu0 %v1262
        %v1388 = vpop.f32.mrb[0].mxu0
        %v1389 = vadd.f32 0.0, %v1388
        %v1390 = vpop.f32.mrb[0].mxu0
        %1391 = vmatprep.mubr.f32.mxu0 0.0
        %1392 = vmatmul.mubr.f32.gmra.mrb[0].mxu0 %v1263
        %v1393 = vpop.f32.mrb[0].mxu0
        %v1394 = vadd.f32 0.0, %v1393
        %v1395 = vpop.f32.mrb[0].mxu0
        %1396 = vmatprep.mubr.f32.mxu0 0.0
        %1397 = vmatmul.mubr.f32.gmra.mrb[0].mxu0 %v1264
        %v1398 = vpop.f32.mrb[0].mxu0
        %v1399 = vadd.f32 0.0, %v1398
        %v1400 = vpop.f32.mrb[0].mxu0
        %1401 = vmatprep.mubr.f32.mxu0 0.0
        %1402 = vmatmul.mubr.f32.gmra.mrb[0].mxu0 %v1265
        %v1403 = vpop.f32.mrb[0].mxu0
        %v1404 = vadd.f32 0.0, %v1403
        %v1405 = vpop.f32.mrb[0].mxu0
        %1406 = vmatprep.mubr.f32.mxu0 0.0
        %1407 = vmatmul.mubr.f32.gmra.mrb[0].mxu0 %v1266
        %v1408 = vpop.f32.mrb[0].mxu0
        %v1409 = vadd.f32 0.0, %v1408
        %v1410 = vpop.f32.mrb[0].mxu0
        %1411 = vdwg.mxu0
        %v1412 = vld [vmem:[%s361] sm:$0xf]
        %v1413 = vld [vmem:[%s361 + $0x4] sm:$0xf]
        %v1414 = vld [vmem:[%s361 + $0x8] sm:$0xf]
        %v1415 = vld [vmem:[%s361 + $0xc] sm:$0xf]
        %v1416 = vld [vmem:[%s361 + $0x10] sm:$0xf]
        %v1417 = vld [vmem:[%s361 + $0x14] sm:$0xf]
        %v1418 = vld [vmem:[%s361 + $0x18] sm:$0xf]
        %v1419 = vld [vmem:[%s361 + $0x1c] sm:$0xf]
        %v1420 = vld [vmem:[%s361 + $0x20] sm:$0xf]
        %v1421 = vld [vmem:[%s361 + $0x24] sm:$0xf]
        %v1422 = vld [vmem:[%s361 + $0x28] sm:$0xf]
        %v1423 = vld [vmem:[%s361 + $0x2c] sm:$0xf]
        %v1424 = vld [vmem:[%s361 + $0x30] sm:$0xf]
        %v1425 = vld [vmem:[%s361 + $0x34] sm:$0xf]
        %v1426 = vld [vmem:[%s361 + $0x38] sm:$0xf]
        %v1427 = vld [vmem:[%s361 + $0x3c] sm:$0xf]
        %v1428 = vunpack.c.l.bf16 %v1412
        %v1429 = vunpack.c.l.bf16 %v1413
        %v1430 = vunpack.c.l.bf16 %v1414
        %v1431 = vunpack.c.l.bf16 %v1415
        %v1432 = vunpack.c.l.bf16 %v1416
        %v1433 = vunpack.c.l.bf16 %v1417
        %v1434 = vunpack.c.l.bf16 %v1418
        %v1435 = vunpack.c.l.bf16 %v1419
        %v1436 = vunpack.c.l.bf16 %v1420
        %v1437 = vunpack.c.l.bf16 %v1421
        %v1438 = vunpack.c.l.bf16 %v1422
        %v1439 = vunpack.c.l.bf16 %v1423
        %v1440 = vunpack.c.l.bf16 %v1424
        %v1441 = vunpack.c.l.bf16 %v1425
        %v1442 = vunpack.c.l.bf16 %v1426
        %v1443 = vunpack.c.l.bf16 %v1427
        %1444 = vmatprep.subr.mxu0 0.0
        %1445 = vmatpush1.msra.mxu0 %v1428
        %1446 = vmatprep.subr.mxu0 0.0
        %1447 = vmatpush1.msra.mxu0 %v1429
        %1448 = vmatprep.subr.mxu0 0.0
        %1449 = vmatpush1.msra.mxu0 %v1430
        %1450 = vmatprep.subr.mxu0 0.0
        %1451 = vmatpush1.msra.mxu0 %v1431
        %1452 = vmatprep.subr.mxu0 0.0
        %1453 = vmatpush1.msra.mxu0 %v1432
        %1454 = vmatprep.subr.mxu0 0.0
        %1455 = vmatpush1.msra.mxu0 %v1433
        %1456 = vmatprep.subr.mxu0 0.0
        %1457 = vmatpush1.msra.mxu0 %v1434
        %1458 = vmatprep.subr.mxu0 0.0
        %1459 = vmatpush1.msra.mxu0 %v1435
        %1460 = vmatprep.subr.mxu0 0.0
        %1461 = vmatpush1.msra.mxu0 %v1436
        %1462 = vmatprep.subr.mxu0 0.0
        %1463 = vmatpush1.msra.mxu0 %v1437
        %1464 = vmatprep.subr.mxu0 0.0
        %1465 = vmatpush1.msra.mxu0 %v1438
        %1466 = vmatprep.subr.mxu0 0.0
        %1467 = vmatpush1.msra.mxu0 %v1439
        %1468 = vmatprep.subr.mxu0 0.0
        %1469 = vmatpush1.msra.mxu0 %v1440
        %1470 = vmatprep.subr.mxu0 0.0
        %1471 = vmatpush1.msra.mxu0 %v1441
        %1472 = vmatprep.subr.mxu0 0.0
        %1473 = vmatpush1.msra.mxu0 %v1442
        %1474 = vmatprep.subr.mxu0 0.0
        %1475 = vmatpush1.msra.mxu0 %v1443
        %1476 = vmatprep.subr.mxu0 0.0
        %1477 = vmatpush1.msra.mxu0 0.0
        %1478 = vmatprep.subr.mxu0 0.0
        %1479 = vmatpush1.msra.mxu0 0.0
        %1480 = vmatprep.subr.mxu0 0.0
        %1481 = vmatpush1.msra.mxu0 0.0
        %1482 = vmatprep.subr.mxu0 0.0
        %1483 = vmatpush1.msra.mxu0 0.0
        %1484 = vmatprep.subr.mxu0 0.0
        %1485 = vmatpush1.msra.mxu0 0.0
        %1486 = vmatprep.subr.mxu0 0.0
        %1487 = vmatpush1.msra.mxu0 0.0
        %1488 = vmatprep.subr.mxu0 0.0
        %1489 = vmatpush1.msra.mxu0 0.0
        %1490 = vmatprep.subr.mxu0 0.0
        %1491 = vmatpush1.msra.mxu0 0.0
        %1492 = vmatprep.subr.mxu0 0.0
        %1493 = vmatpush1.msra.mxu0 0.0
        %1494 = vmatprep.subr.mxu0 0.0
        %1495 = vmatpush1.msra.mxu0 0.0
        %1496 = vmatprep.subr.mxu0 0.0
        %1497 = vmatpush1.msra.mxu0 0.0
        %1498 = vmatprep.subr.mxu0 0.0
        %1499 = vmatpush1.msra.mxu0 0.0
        %1500 = vmatprep.subr.mxu0 0.0
        %1501 = vmatpush1.msra.mxu0 0.0
        %1502 = vmatprep.subr.mxu0 0.0
        %1503 = vmatpush1.msra.mxu0 0.0
        %1504 = vmatprep.subr.mxu0 0.0
        %1505 = vmatpush1.msra.mxu0 0.0
        %1506 = vmatprep.subr.mxu0 0.0
        %1507 = vmatpush1.msra.mxu0 0.0
        %1508 = vmatprep.mubr.f32.mxu0 0.0
        %1509 = vmatmul.mubr.f32.gmra.mrb[0].mxu0 %v1150
        %v1510 = vpop.f32.mrb[0].mxu0
        %v1511 = vadd.f32 0.0, %v1510
        %v1512 = vpop.f32.mrb[0].mxu0
        %1513 = vmatprep.mubr.f32.mxu0 0.0
        %1514 = vmatmul.mubr.f32.gmra.mrb[0].mxu0 %v1151
        %v1515 = vpop.f32.mrb[0].mxu0
        %v1516 = vadd.f32 0.0, %v1515
        %v1517 = vpop.f32.mrb[0].mxu0
        %1518 = vmatprep.mubr.f32.mxu0 0.0
        %1519 = vmatmul.mubr.f32.gmra.mrb[0].mxu0 %v1152
        %v1520 = vpop.f32.mrb[0].mxu0
        %v1521 = vadd.f32 0.0, %v1520
        %v1522 = vpop.f32.mrb[0].mxu0
        %1523 = vmatprep.mubr.f32.mxu0 0.0
        %1524 = vmatmul.mubr.f32.gmra.mrb[0].mxu0 %v1153
        %v1525 = vpop.f32.mrb[0].mxu0
        %v1526 = vadd.f32 0.0, %v1525
        %v1527 = vpop.f32.mrb[0].mxu0
        %1528 = vmatprep.mubr.f32.mxu0 0.0
        %1529 = vmatmul.mubr.f32.gmra.mrb[0].mxu0 %v1154
        %v1530 = vpop.f32.mrb[0].mxu0
        %v1531 = vadd.f32 0.0, %v1530
        %v1532 = vpop.f32.mrb[0].mxu0
        %1533 = vmatprep.mubr.f32.mxu0 0.0
        %1534 = vmatmul.mubr.f32.gmra.mrb[0].mxu0 %v1155
        %v1535 = vpop.f32.mrb[0].mxu0
        %v1536 = vadd.f32 0.0, %v1535
        %v1537 = vpop.f32.mrb[0].mxu0
        %1538 = vmatprep.mubr.f32.mxu0 0.0
        %1539 = vmatmul.mubr.f32.gmra.mrb[0].mxu0 %v1156
        %v1540 = vpop.f32.mrb[0].mxu0
        %v1541 = vadd.f32 0.0, %v1540
        %v1542 = vpop.f32.mrb[0].mxu0
        %1543 = vmatprep.mubr.f32.mxu0 0.0
        %1544 = vmatmul.mubr.f32.gmra.mrb[0].mxu0 %v1157
        %v1545 = vpop.f32.mrb[0].mxu0
        %v1546 = vadd.f32 0.0, %v1545
        %v1547 = vpop.f32.mrb[0].mxu0
        %1548 = vmatprep.mubr.f32.mxu0 0.0
        %1549 = vmatmul.mubr.f32.gmra.mrb[0].mxu0 %v1158
        %v1550 = vpop.f32.mrb[0].mxu0
        %v1551 = vadd.f32 0.0, %v1550
        %v1552 = vpop.f32.mrb[0].mxu0
        %1553 = vmatprep.mubr.f32.mxu0 0.0
        %1554 = vmatmul.mubr.f32.gmra.mrb[0].mxu0 %v1159
        %v1555 = vpop.f32.mrb[0].mxu0
        %v1556 = vadd.f32 0.0, %v1555
        %v1557 = vpop.f32.mrb[0].mxu0
        %1558 = vmatprep.mubr.f32.mxu0 0.0
        %1559 = vmatmul.mubr.f32.gmra.mrb[0].mxu0 %v1160
        %v1560 = vpop.f32.mrb[0].mxu0
        %v1561 = vadd.f32 0.0, %v1560
        %v1562 = vpop.f32.mrb[0].mxu0
        %1563 = vmatprep.mubr.f32.mxu0 0.0
        %1564 = vmatmul.mubr.f32.gmra.mrb[0].mxu0 %v1161
        %v1565 = vpop.f32.mrb[0].mxu0
        %v1566 = vadd.f32 0.0, %v1565
        %v1567 = vpop.f32.mrb[0].mxu0
        %1568 = vmatprep.mubr.f32.mxu0 0.0
        %1569 = vmatmul.mubr.f32.gmra.mrb[0].mxu0 %v1162
        %v1570 = vpop.f32.mrb[0].mxu0
        %v1571 = vadd.f32 0.0, %v1570
        %v1572 = vpop.f32.mrb[0].mxu0
        %1573 = vmatprep.mubr.f32.mxu0 0.0
        %1574 = vmatmul.mubr.f32.gmra.mrb[0].mxu0 %v1163
        %v1575 = vpop.f32.mrb[0].mxu0
        %v1576 = vadd.f32 0.0, %v1575
        %v1577 = vpop.f32.mrb[0].mxu0
        %1578 = vmatprep.mubr.f32.mxu0 0.0
        %1579 = vmatmul.mubr.f32.gmra.mrb[0].mxu0 %v1164
        %v1580 = vpop.f32.mrb[0].mxu0
        %v1581 = vadd.f32 0.0, %v1580
        %v1582 = vpop.f32.mrb[0].mxu0
        %1583 = vmatprep.mubr.f32.mxu0 0.0
        %1584 = vmatmul.mubr.f32.gmra.mrb[0].mxu0 %v1165
        %v1585 = vpop.f32.mrb[0].mxu0
        %v1586 = vadd.f32 0.0, %v1585
        %v1587 = vpop.f32.mrb[0].mxu0
        %1588 = vdwg.mxu0
        %v1589 = vmul.f32 %v1334, %v1511
        %v1590 = vmul.f32 %v1339, %v1516
        %v1591 = vmul.f32 %v1344, %v1521
        %v1592 = vmul.f32 %v1349, %v1526
        %v1593 = vmul.f32 %v1354, %v1531
        %v1594 = vmul.f32 %v1359, %v1536
        %v1595 = vmul.f32 %v1364, %v1541
        %v1596 = vmul.f32 %v1369, %v1546
        %v1597 = vmul.f32 %v1374, %v1551
        %v1598 = vmul.f32 %v1379, %v1556
        %v1599 = vmul.f32 %v1384, %v1561
        %v1600 = vmul.f32 %v1389, %v1566
        %v1601 = vmul.f32 %v1394, %v1571
        %v1602 = vmul.f32 %v1399, %v1576
        %v1603 = vmul.f32 %v1404, %v1581
        %v1604 = vmul.f32 %v1409, %v1586
        %1605 = vadd.xlane.f32.xlu0 %v1589
        %v1606 = vpop.xlane.xlu0 %1605
        %1607 = vadd.xlane.f32.xlu0 %v1590
        %v1608 = vpop.xlane.xlu0 %1607
        %1609 = vadd.xlane.f32.xlu0 %v1591
        %v1610 = vpop.xlane.xlu0 %1609
        %1611 = vadd.xlane.f32.xlu0 %v1592
        %v1612 = vpop.xlane.xlu0 %1611
        %1613 = vadd.xlane.f32.xlu0 %v1593
        %v1614 = vpop.xlane.xlu0 %1613
        %1615 = vadd.xlane.f32.xlu0 %v1594
        %v1616 = vpop.xlane.xlu0 %1615
        %1617 = vadd.xlane.f32.xlu0 %v1595
        %v1618 = vpop.xlane.xlu0 %1617
        %1619 = vadd.xlane.f32.xlu0 %v1596
        %v1620 = vpop.xlane.xlu0 %1619
        %1621 = vadd.xlane.f32.xlu0 %v1597
        %v1622 = vpop.xlane.xlu0 %1621
        %1623 = vadd.xlane.f32.xlu0 %v1598
        %v1624 = vpop.xlane.xlu0 %1623
        %1625 = vadd.xlane.f32.xlu0 %v1599
        %v1626 = vpop.xlane.xlu0 %1625
        %1627 = vadd.xlane.f32.xlu0 %v1600
        %v1628 = vpop.xlane.xlu0 %1627
        %1629 = vadd.xlane.f32.xlu0 %v1601
        %v1630 = vpop.xlane.xlu0 %1629
        %1631 = vadd.xlane.f32.xlu0 %v1602
        %v1632 = vpop.xlane.xlu0 %1631
        %1633 = vadd.xlane.f32.xlu0 %v1603
        %v1634 = vpop.xlane.xlu0 %1633
        %1635 = vadd.xlane.f32.xlu0 %v1604
        %v1636 = vpop.xlane.xlu0 %1635
        %v1637 = vadd.f32 %v1606, %v1608
        %v1638 = vadd.f32 %v1637, %v1610
        %v1639 = vadd.f32 %v1638, %v1612
        %v1640 = vadd.f32 %v1639, %v1614
        %v1641 = vadd.f32 %v1640, %v1616
        %v1642 = vadd.f32 %v1641, %v1618
        %v1643 = vadd.f32 %v1642, %v1620
        %v1644 = vadd.f32 %v1643, %v1622
        %v1645 = vadd.f32 %v1644, %v1624
        %v1646 = vadd.f32 %v1645, %v1626
        %v1647 = vadd.f32 %v1646, %v1628
        %v1648 = vadd.f32 %v1647, %v1630
        %v1649 = vadd.f32 %v1648, %v1632
        %v1650 = vadd.f32 %v1649, %v1634
        %v1651 = vadd.f32 %v1650, %v1636
        %v1652 = vrot.slane %v1651, 4
        %v1653 = vadd.f32 %v1651, %v1652
        %v1654 = vrot.slane %v1653, 2
        %v1655 = vadd.f32 %v1653, %v1654
        %v1656 = vrot.slane %v1655, 1
        %v1657 = vadd.f32 %v1655, %v1656
        %v1658 = vadd.f32 %v1234, %v1657
        %vm1659 = vcmask 0
        %1660 = vst.msk [vmem:[%s414] sm:$0x1] %vm1659, %v1658
        %1661 = vst [vmem:[%s411] sm:$0xff] %v1150
        %1662 = vst [vmem:[%s411 + $0x8] sm:$0xff] %v1151
        %1663 = vst [vmem:[%s411 + $0x10] sm:$0xff] %v1152
        %1664 = vst [vmem:[%s411 + $0x18] sm:$0xff] %v1153
        %1665 = vst [vmem:[%s411 + $0x20] sm:$0xff] %v1154
        %1666 = vst [vmem:[%s411 + $0x28] sm:$0xff] %v1155
        %1667 = vst [vmem:[%s411 + $0x30] sm:$0xff] %v1156
        %1668 = vst [vmem:[%s411 + $0x38] sm:$0xff] %v1157
        %1669 = vst [vmem:[%s411 + $0x40] sm:$0xff] %v1158
        %1670 = vst [vmem:[%s411 + $0x48] sm:$0xff] %v1159
        %1671 = vst [vmem:[%s411 + $0x50] sm:$0xff] %v1160
        %1672 = vst [vmem:[%s411 + $0x58] sm:$0xff] %v1161
        %1673 = vst [vmem:[%s411 + $0x60] sm:$0xff] %v1162
        %1674 = vst [vmem:[%s411 + $0x68] sm:$0xff] %v1163
        %1675 = vst [vmem:[%s411 + $0x70] sm:$0xff] %v1164
        %1676 = vst [vmem:[%s411 + $0x78] sm:$0xff] %v1165
        %p1677 = scmp.lt.s32.totalorder %s35, 1
        %s1678 = scalar_select %p1677, %s35, 1
        %s1679 = scalar_lea.vmem %s6, %s1678
        %s1680 = sand.u32 %s194, 1
        %s1681 = scalar_lea.sflag [#allocation6], %s1680
        %s1682 = sand.u32 %s194, 1
        %s1683 = smul.addr %s1682, 128
        %s1684 = scalar_lea.vmem [#allocation13], %s1683
        // Predicated region
        $region61: #{tpu_custom_call.1} parent=39 // pred_check
          %p1685 = pneg %p178
        $region62: #{tpu_custom_call.1} parent=39 // pred_check_branch
          %1687 = sbr.rel (%p1685) target = $region64
        $region63: #{tpu_custom_call.1} parent=39 // pred_region
          _
        $region64: #{tpu_custom_call.1} parent=39 // pred_fallthru
          _
        // Predicated region
        $region65: #{tpu_custom_call.1} parent=39 // pred_check
          %p1688 = pneg %p204
        $region66: #{tpu_custom_call.1} parent=39 // pred_check_branch
          %1690 = sbr.rel (%p1688) target = $region68
        $region67: #{tpu_custom_call.1} parent=39 // pred_region
          %s1692 = ssub.s32 2048, 2048
          %1693 = vsyncadd %s1681, %s1692
          %s1694 = smul.addr %s35, 16
          %s1695 = smul.addr %s1694, 128
          %s1696 = scalar_lea.hbm %s7, %s1695
          %s1697 = sshll.u32 %s1684, 4
          %s1698 = int_to_ptr.vmem [resolvable:$true] %s1697
          %1703 = dma.vmem_to_hbm [thread:$0]  %s1698, 2048, %s1696, %s1681, 128, 128, 8
        $region68: #{tpu_custom_call.1} parent=39 // pred_fallthru
          _
      $region40: #{tpu_custom_call.1} parent=5 // pred_fallthru
        _
      %p1704 = scmp.le.s32.totalorder 2, %s30
      // Predicated region
      $region69: #{tpu_custom_call.1} parent=5 // pred_check
        %p1705 = pneg %p1704
      $region70: #{tpu_custom_call.1} parent=5 // pred_check_branch
        %1707 = sbr.rel (%p1705) target = $region72
      $region71: #{tpu_custom_call.1} parent=5 // pred_region
        %s1708 = ssub.s32 %s30, 2
        // Predicated region
        $region73: #{tpu_custom_call.1} parent=71 // pred_check
          %p1709 = pneg %p184
        $region74: #{tpu_custom_call.1} parent=71 // pred_check_branch
          %1711 = sbr.rel (%p1709) target = $region76
        $region75: #{tpu_custom_call.1} parent=71 // pred_region
          %p1712 = scmp.lt.s32.totalorder %s36, 1
          %s1713 = scalar_select %p1712, %s36, 1
          %s1714 = scalar_lea.vmem %s6, %s1713
        $region76: #{tpu_custom_call.1} parent=71 // pred_fallthru
          _
        // Predicated region
        $region77: #{tpu_custom_call.1} parent=71 // pred_check
          %p1715 = pneg %p210
        $region78: #{tpu_custom_call.1} parent=71 // pred_check_branch
          %1717 = sbr.rel (%p1715) target = $region80
        $region79: #{tpu_custom_call.1} parent=71 // pred_region
          %s1718 = sand.u32 %s195, 1
          %s1719 = scalar_lea.sflag [#allocation6], %s1718
          %s1720 = sand.u32 %s195, 1
          %s1721 = smul.addr %s1720, 128
          %s1722 = scalar_lea.vmem [#allocation13], %s1721
          %1723 = dma.done %s1719, 2048
        $region80: #{tpu_custom_call.1} parent=71 // pred_fallthru
          _
      $region72: #{tpu_custom_call.1} parent=5 // pred_fallthru
        _
    $region6: #{tpu_custom_call.1} parent=1 // loop_footer
      %s34 = sadd.s32 1, %s30
    $region7: #{tpu_custom_call.1} parent=1 // loop_footer_branch
      %29 = sbr.rel target = $region3
    $region8: #{tpu_custom_call.1} parent=1 // loop_exit
      _
    %1724 = vsyncpa [#allocation5], 1
    %s1725 = scalar_lea.sflag [#allocation5], 1
    %1726 = vsyncpa %s1725, 1
    %1727 = vsyncpa [#allocation8], 1
    %s1728 = scalar_lea.sflag [#allocation8], 1
    %1729 = vsyncpa %s1728, 1
    %1730 = vsyncpa [#allocation11], 1
    %s1731 = scalar_lea.sflag [#allocation11], 1
    %1732 = vsyncpa %s1731, 1
    %1733 = vsyncpa [#allocation6], 1
    %s1734 = scalar_lea.sflag [#allocation6], 1
    %1735 = vsyncpa %s1734, 1

</llo_original>
